<compile_context>
chip_gen: v7x
topology: tpu7x:2x2x1
jax: 0.10.0
libtpu: 0.0.40
codegen_flags: <defaults>
</compile_context>

<pallas_src>
import jax
import jax.numpy as jnp
from jax.experimental import pallas as pl
from jax.experimental.pallas import tpu as pltpu

# ---------------- configuration (Mamba2Config-equivalent, small) ----------------
HIDDEN    = 32                      # config.hidden_size
STATE     = 16                      # config.state_size          (N)
HEAD_DIM  = 16                      # config.head_dim            (P)
NUM_HEADS = 4                       # config.num_heads           (H)
INTER     = NUM_HEADS * HEAD_DIM    # config.intermediate_size   (64)
CONV_K    = 4                       # config.conv_kernel
CHUNK     = 8                       # config.chunk_size
SEQ       = 16                      # example seq_len (multiple of CHUNK)
BATCH     = 2
DT_MIN, DT_MAX = 0.0, 100.0         # config.time_step_limit
EPS_BLOCK = 1e-5                    # config.layer_norm_epsilon (block RMSNorm)
EPS_MIXER = 1e-5                    # gated RMSNorm eps (hard-coded in module)
CONV_DIM  = INTER + 2 * STATE                  # 96
PROJ_DIM  = 2 * (INTER + STATE) + NUM_HEADS    # 164  (d_mlp == 0)


def _silu(x):
    return x * (1.0 / (1.0 + jnp.exp(-x)))


# ------------------------------- Pallas kernel ----------------------------------
def mamba2_block_kernel(h_ref, norm_w_ref, w_zxbc_ref, w_dt_ref, conv_w_ref,
                        conv_b_ref, dt_bias_ref, neg_a_ref, d_ref,
                        mix_norm_w_ref, out_w_ref, o_ref, state_ref, ext_ref):
    cs, K, N, I, P, H = CHUNK, CONV_K, STATE, INTER, HEAD_DIM, NUM_HEADS
    bf = jnp.bfloat16
    c = pl.program_id(1)

    # ---- new sequence (batch element): reset carried SSM state & conv history ----
    @pl.when(c == 0)
    def _reset():
        state_ref[...] = jnp.zeros_like(state_ref)
        ext_ref[...] = jnp.zeros_like(ext_ref)

    hs = h_ref[...].astype(jnp.float32)                       # (cs, HIDDEN)
    residual = hs                                             # residual_in_fp32

    # ---- block-level RMSNorm ----
    var = jnp.mean(hs * hs, axis=-1, keepdims=True)
    xn = hs * jax.lax.rsqrt(var + EPS_BLOCK) * norm_w_ref[...]

    # ---- in_proj: merged z|xBC bf16 dot; dt kept f32 (feeds exp(A*dt) decays) ----
    zxbc = jnp.dot(xn.astype(bf), w_zxbc_ref[...],
                   preferred_element_type=jnp.float32)        # (cs, I + CONV_DIM)
    z = zxbc[:, :I]                                           # (cs, I)
    xbc_pre = zxbc[:, I:]                                     # (cs, CONV_DIM)
    dt_full = jnp.dot(xn, w_dt_ref[...],
                      preferred_element_type=jnp.float32)     # (cs, I) per-channel dt

    # ---- depthwise causal conv1d + SiLU via carried (K-1)-row history scratch ----
    # ext rows [0, K-1) hold the previous chunk's last K-1 pre-conv rows (zeros at
    # sequence start); rows [K-1, K-1+cs) hold the current chunk.
    ext_ref[K - 1:K - 1 + cs, :] = xbc_pre
    ext = ext_ref[...]                                        # (cs + K - 1, CONV_DIM)
    acc = jnp.zeros((cs, CONV_DIM), jnp.float32) + conv_b_ref[...]
    for k in range(K):                                        # w[K-1] multiplies x[t]
        acc = acc + ext[k:k + cs, :] * conv_w_ref[k:k + 1, :]
    ext_ref[0:K - 1, :] = ext[cs:cs + K - 1, :]               # history for next chunk
    xbc = _silu(acc)

    x2 = xbc[:, :I]                                           # (cs, I)  pre-dt x
    Bm = xbc[:, I:I + N]                                      # (cs, N)
    Cm = xbc[:, I + N:]                                       # (cs, N)

    # ---- dt = clamp(softplus(dt + dt_bias)); decay math stays f32 ----
    dtb = dt_full + dt_bias_ref[...]
    dt_sp = jnp.where(dtb > 20.0, dtb,
                      jnp.log1p(jnp.exp(jnp.minimum(dtb, 20.0))))
    dt_sp = jnp.clip(dt_sp, DT_MIN, DT_MAX)                   # (cs, I)
    A_dt = dt_sp * neg_a_ref[...]                             # (cs, I), <= 0
    xdt = x2 * dt_sp                                          # (cs, I)

    # ---- within-chunk inclusive cumsum via constant (cs, cs) lower-tri mask ----
    row = jax.lax.broadcasted_iota(jnp.int32, (cs, cs), 0)
    col = jax.lax.broadcasted_iota(jnp.int32, (cs, cs), 1)
    causal = row >= col
    tri = causal.astype(jnp.float32)
    acs = jnp.dot(tri, A_dt, preferred_element_type=jnp.float32)   # (cs, I)
    a_last = acs[cs - 1:cs, :]                                 # (1, I) chunk total
    sdo = jnp.exp(acs)                                         # decay from chunk start
    wx = xdt * jnp.exp(a_last - acs)                           # decay to chunk end

    # ---- inter-chunk contribution from carried state (all heads, one dot) ----
    y = sdo * jnp.dot(Cm.astype(bf), state_ref[...].astype(bf),
                      preferred_element_type=jnp.float32)      # (cs, I)

    # ---- intra-chunk (diagonal-block) contribution; heads stay lane-packed ----
    CB = jax.lax.dot_general(Cm.astype(bf), Bm.astype(bf),
                             (((1,), (1,)), ((), ())),
                             preferred_element_type=jnp.float32)    # (cs, cs)
    lane = jax.lax.broadcasted_iota(jnp.int32, (1, I), 1)
    for h in range(H):
        a_h = acs[:, h * P:h * P + 1]                           # (cs, 1), same over the head's P lanes
        diff = a_h - a_h.reshape(1, cs)                         # (cs, cs)
        L_h = jnp.where(causal, jnp.exp(jnp.minimum(diff, 0.0)), 0.0)
        xdt_h = xdt * ((lane >= h * P) & (lane < (h + 1) * P)).astype(jnp.float32)
        y = y + jnp.dot((CB * L_h).astype(bf), xdt_h.astype(bf),
                        preferred_element_type=jnp.float32)     # (cs, I)

    # ---- carry state across chunks: decay + accumulate (all heads, one dot) ----
    contrib = jax.lax.dot_general(Bm.astype(bf), wx.astype(bf),
                                  (((0,), (0,)), ((), ())),
                                  preferred_element_type=jnp.float32)   # (N, I)
    state_ref[...] = jnp.exp(a_last) * state_ref[...] + contrib

    # ---- D residual (pre-dt x), gated RMSNorm, out_proj, residual add ----
    y = y + x2 * d_ref[...]
    yg = y * _silu(z)
    v2 = jnp.mean(yg * yg, axis=-1, keepdims=True)
    yn = yg * jax.lax.rsqrt(v2 + EPS_MIXER) * mix_norm_w_ref[...]
    out = jnp.dot(yn.astype(bf), out_w_ref[...],
                  preferred_element_type=jnp.float32)           # (cs, HIDDEN)
    o_ref[...] = residual + out


# --------------------------------- wrapper ---------------------------------------
def mamba2_block_forward(hidden, params):
    """Returns (hidden_states_out, last_state=None) like Mamba2Block.forward."""
    B, L, HD = hidden.shape
    assert HD == HIDDEN
    assert L % CHUNK == 0, "TODO(synk): pad_size > 0 path not implemented"
    n_chunks = L // CHUNK

    # ---- parameter prep (layout / broadcast / dtype work, done once outside) ----
    in_w = params["in_w"]                                    # (HIDDEN, PROJ_DIM), pre-transposed
    w_zxbc = in_w[:, :INTER + CONV_DIM].astype(jnp.bfloat16)           # z|xBC are adjacent
    w_dt   = jnp.repeat(in_w[:, INTER + CONV_DIM:], HEAD_DIM, axis=1)  # per-channel dt, f32

    row2d = lambda v: v.reshape(1, -1)
    norm_w       = row2d(params["norm_w"])
    conv_b       = row2d(params["conv_b"])
    dt_bias_full = row2d(jnp.repeat(params["dt_bias"], HEAD_DIM))
    neg_a_full   = row2d(jnp.repeat(-jnp.exp(params["A_log"]), HEAD_DIM))
    d_full       = row2d(jnp.repeat(params["D"], HEAD_DIM))
    mix_norm_w   = row2d(params["mix_norm_w"])
    out_w        = params["out_w"].astype(jnp.bfloat16)
    conv_w       = params["conv_w_t"]                        # (CONV_K, CONV_DIM) f32

    def full2d(a):
        return pl.BlockSpec(a.shape, lambda b, c: (0, 0))

    out = pl.pallas_call(
        mamba2_block_kernel,
        out_shape=jax.ShapeDtypeStruct((B, L, HIDDEN), jnp.float32),
        grid=(B, n_chunks),
        in_specs=[
            pl.BlockSpec((None, CHUNK, HIDDEN), lambda b, c: (b, c, 0)),
            full2d(norm_w), full2d(w_zxbc), full2d(w_dt), full2d(conv_w),
            full2d(conv_b), full2d(dt_bias_full), full2d(neg_a_full),
            full2d(d_full), full2d(mix_norm_w), full2d(out_w),
        ],
        out_specs=pl.BlockSpec((None, CHUNK, HIDDEN), lambda b, c: (b, c, 0)),
        scratch_shapes=[
            pltpu.VMEM((STATE, INTER), jnp.float32),               # carried SSM state
            pltpu.VMEM((CHUNK + CONV_K - 1, CONV_DIM), jnp.float32),  # conv history + chunk
        ],
        compiler_params=pltpu.CompilerParams(
            dimension_semantics=("parallel", "arbitrary")),
    )(hidden.astype(jnp.float32), norm_w, w_zxbc, w_dt, conv_w, conv_b,
      dt_bias_full, neg_a_full, d_full, mix_norm_w, out_w)
    return out, None


# --------------------------- pure-JAX f32 reference ------------------------------
def mamba2_block_reference(hidden, p):
    B, L, _ = hidden.shape
    hs = hidden.astype(jnp.float32)
    residual = hs
    var = jnp.mean(hs * hs, axis=-1, keepdims=True)
    xn = hs * jax.lax.rsqrt(var + EPS_BLOCK) * p["norm_w"]
    zxbcdt = jnp.einsum("bld,de->ble", xn, p["in_w"])
    z   = zxbcdt[..., :INTER]
    xBC = zxbcdt[..., INTER:INTER + CONV_DIM]
    dt  = zxbcdt[..., INTER + CONV_DIM:]
    xpad = jnp.pad(xBC, ((0, 0), (CONV_K - 1, 0), (0, 0)))
    conv = sum(xpad[:, k:k + L, :] * p["conv_w_t"][k] for k in range(CONV_K)) + p["conv_b"]
    xBC = _silu(conv)
    x  = xBC[..., :INTER]
    B_ = xBC[..., INTER:INTER + STATE]
    C_ = xBC[..., INTER + STATE:]
    dt = jnp.clip(jax.nn.softplus(dt + p["dt_bias"]), DT_MIN, DT_MAX)
    A = -jnp.exp(p["A_log"])
    x4 = x.reshape(B, L, NUM_HEADS, HEAD_DIM)
    D_res = p["D"][None, None, :, None] * x4
    xdt = x4 * dt[..., None]
    A_dt = dt * A
    cs, Cn = CHUNK, L // CHUNK
    xc = xdt.reshape(B, Cn, cs, NUM_HEADS, HEAD_DIM)
    Bc = B_.reshape(B, Cn, cs, STATE)
    Cc = C_.reshape(B, Cn, cs, STATE)
    Ac = A_dt.reshape(B, Cn, cs, NUM_HEADS).transpose(0, 3, 1, 2)
    A_cum = jnp.cumsum(Ac, axis=-1)
    i = jnp.arange(cs)[:, None]
    j = jnp.arange(cs)[None, :]
    Lmat = jnp.where(i >= j, jnp.exp(A_cum[..., :, None] - A_cum[..., None, :]), 0.0)
    Y_diag = jnp.einsum("bcln,bcsn,bhcls,bcshp->bclhp", Cc, Bc, Lmat, xc)
    decay_states = jnp.exp(A_cum[..., -1:] - A_cum)
    states = jnp.einsum("bcln,bhcl,bclhp->bchpn", Bc, decay_states, xc)
    states = jnp.concatenate([jnp.zeros_like(states[:, :1]), states], axis=1)
    cc = jnp.cumsum(jnp.pad(A_cum[..., -1], ((0, 0), (0, 0), (1, 0))), axis=-1)
    zi = jnp.arange(Cn + 1)[:, None]
    zj = jnp.arange(Cn + 1)[None, :]
    decay_chunk = jnp.where(zi >= zj, jnp.exp(cc[..., :, None] - cc[..., None, :]), 0.0)
    new_states = jnp.einsum("bhzc,bchpn->bzhpn", decay_chunk, states)
    states_prev = new_states[:, :-1]
    sdo = jnp.exp(A_cum)
    Y_off = jnp.einsum("bcln,bchpn,bhcl->bclhp", Cc, states_prev, sdo)
    y = (Y_diag + Y_off).reshape(B, L, NUM_HEADS, HEAD_DIM) + D_res
    y = y.reshape(B, L, INTER)
    yg = y * _silu(z)
    v2 = jnp.mean(yg * yg, axis=-1, keepdims=True)
    yn = yg * jax.lax.rsqrt(v2 + EPS_MIXER) * p["mix_norm_w"]
    out = jnp.einsum("bld,de->ble", yn, p["out_w"])
    return residual + out


# --------------------------------- main ------------------------------------------
if __name__ == "__main__":
    key = jax.random.PRNGKey(0)
    ks = jax.random.split(key, 9)
    hidden = jax.random.normal(ks[0], (BATCH, SEQ, HIDDEN), dtype=jnp.float32)
    params = {
        # torch shapes: norm.weight (hidden,), in_proj.weight (164, 32) -> transposed,
        # conv1d.weight (96, 1, 4) -> (4, 96), conv1d.bias (96,), dt_bias (H,),
        # A_log (H,), D (H,), mixer norm weight (I,), out_proj.weight (32, 64) -> transposed.
        "norm_w":     1.0 + 0.1 * jax.random.normal(ks[1], (HIDDEN,), jnp.float32),
        "in_w":       0.05 * jax.random.normal(ks[2], (HIDDEN, PROJ_DIM), jnp.float32),
        "conv_w_t":   0.2 * jax.random.normal(ks[3], (CONV_K, CONV_DIM), jnp.float32),
        "conv_b":     0.1 * jax.random.normal(ks[4], (CONV_DIM,), jnp.float32),
        "dt_bias":    jax.random.uniform(ks[5], (NUM_HEADS,), jnp.float32),
        "A_log":      jnp.log(jax.random.uniform(ks[6], (NUM_HEADS,), jnp.float32,
                                                 minval=1.0, maxval=16.0)),
        "D":          jnp.ones((NUM_HEADS,), jnp.float32),
        "mix_norm_w": 1.0 + 0.1 * jax.random.normal(ks[7], (INTER,), jnp.float32),
        "out_w":      0.05 * jax.random.normal(ks[8], (INTER, HIDDEN), jnp.float32),
    }

    out, last_state = mamba2_block_forward(hidden, params)
    out = jax.block_until_ready(out)

    ref = jax.block_until_ready(mamba2_block_reference(hidden, params))
    max_err = float(jnp.max(jnp.abs(out - ref)))
    mean_err = float(jnp.mean(jnp.abs(out - ref)))
    # tolerance calibrated for bf16 MXU operands vs. pure-f32 reference
    assert max_err < 6e-2 and mean_err < 1e-2, \
        f"kernel/reference mismatch: max={max_err}, mean={mean_err}"
    print("KERNEL_OK")
</pallas_src>

<mosaic_0001>
module attributes {stable_mosaic.version = 11 : i64} {
  func.func @mamba2_block_kernel(%arg0: i32, %arg1: i32, %arg2: memref<1x8x32xf32, #tpu.memory_space<vmem>>, %arg3: memref<1x32xf32, #tpu.memory_space<vmem>>, %arg4: memref<32x160xbf16, #tpu.memory_space<vmem>>, %arg5: memref<32x64xf32, #tpu.memory_space<vmem>>, %arg6: memref<4x96xf32, #tpu.memory_space<vmem>>, %arg7: memref<1x96xf32, #tpu.memory_space<vmem>>, %arg8: memref<1x64xf32, #tpu.memory_space<vmem>>, %arg9: memref<1x64xf32, #tpu.memory_space<vmem>>, %arg10: memref<1x64xf32, #tpu.memory_space<vmem>>, %arg11: memref<1x64xf32, #tpu.memory_space<vmem>>, %arg12: memref<64x32xbf16, #tpu.memory_space<vmem>>, %arg13: memref<1x8x32xf32, #tpu.memory_space<vmem>>, %arg14: memref<16x64xf32, #tpu.memory_space<vmem>>, %arg15: memref<11x96xf32, #tpu.memory_space<vmem>>) attributes {dimension_semantics = [#tpu.dimension_semantics<parallel>, #tpu.dimension_semantics<arbitrary>], iteration_bounds = array<i64: 2, 2>, scalar_prefetch = 0 : i64, scratch_operands = 2 : i64, tpu.core_type = #tpu.core_type<tc>, window_params = [{transform_indices = @transform_0, window_bounds = array<i64: 1, 8, 32>}, {pipeline_mode = #tpu.pipeline_mode<synchronous>, transform_indices = @transform_1, window_bounds = array<i64: 1, 32>}, {pipeline_mode = #tpu.pipeline_mode<synchronous>, transform_indices = @transform_2, window_bounds = array<i64: 32, 160>}, {pipeline_mode = #tpu.pipeline_mode<synchronous>, transform_indices = @transform_3, window_bounds = array<i64: 32, 64>}, {pipeline_mode = #tpu.pipeline_mode<synchronous>, transform_indices = @transform_4, window_bounds = array<i64: 4, 96>}, {pipeline_mode = #tpu.pipeline_mode<synchronous>, transform_indices = @transform_5, window_bounds = array<i64: 1, 96>}, {pipeline_mode = #tpu.pipeline_mode<synchronous>, transform_indices = @transform_6, window_bounds = array<i64: 1, 64>}, {pipeline_mode = #tpu.pipeline_mode<synchronous>, transform_indices = @transform_7, window_bounds = array<i64: 1, 64>}, {pipeline_mode = #tpu.pipeline_mode<synchronous>, transform_indices = @transform_8, window_bounds = array<i64: 1, 64>}, {pipeline_mode = #tpu.pipeline_mode<synchronous>, transform_indices = @transform_9, window_bounds = array<i64: 1, 64>}, {pipeline_mode = #tpu.pipeline_mode<synchronous>, transform_indices = @transform_10, window_bounds = array<i64: 64, 32>}, {transform_indices = @transform_11, window_bounds = array<i64: 1, 8, 32>}]} {
    %c0_i32 = arith.constant 0 : i32
    %0 = arith.cmpi eq, %arg1, %c0_i32 : i32
    %1 = arith.extui %0 : i1 to i32
    %c0_i32_0 = arith.constant 0 : i32
    %2 = arith.cmpi ne, %1, %c0_i32_0 : i32
    scf.if %2 {
      %cst_80 = arith.constant 0.000000e+00 : f32
      %241 = vector.broadcast %cst_80 : f32 to vector<16x64xf32>
      %c0_81 = arith.constant 0 : index
      %c0_82 = arith.constant 0 : index
      %242 = vector.load %arg14[%c0_81, %c0_82] : memref<16x64xf32, #tpu.memory_space<vmem>>, vector<16x64xf32>
      tpu.vector_store %arg14[%c0_81, %c0_82], %241 {strides = array<i32>} : memref<16x64xf32, #tpu.memory_space<vmem>>, vector<16x64xf32>,
      %cst_83 = arith.constant 0.000000e+00 : f32
      %243 = vector.broadcast %cst_83 : f32 to vector<11x96xf32>
      %c0_84 = arith.constant 0 : index
      %c0_85 = arith.constant 0 : index
      %244 = vector.load %arg15[%c0_84, %c0_85] : memref<11x96xf32, #tpu.memory_space<vmem>>, vector<11x96xf32>
      tpu.vector_store %arg15[%c0_84, %c0_85], %243 {strides = array<i32>} : memref<11x96xf32, #tpu.memory_space<vmem>>, vector<11x96xf32>,
    } else {
    }
    %c0 = arith.constant 0 : index
    %c0_1 = arith.constant 0 : index
    %c0_2 = arith.constant 0 : index
    %3 = vector.load %arg2[%c0, %c0_1, %c0_2] : memref<1x8x32xf32, #tpu.memory_space<vmem>>, vector<1x8x32xf32>
    %4 = vector.shape_cast %3 : vector<1x8x32xf32> to vector<8x32xf32>
    %5 = arith.mulf %4, %4 : vector<8x32xf32>
    %cst = arith.constant dense<0.000000e+00> : vector<8xf32>
    %6 = vector.multi_reduction <add>, %5, %cst [1] : vector<8x32xf32> to vector<8xf32>
    %7 = vector.shape_cast %6 : vector<8xf32> to vector<8x1xf32>
    %cst_3 = arith.constant 3.200000e+01 : f32
    %8 = vector.broadcast %cst_3 : f32 to vector<8x1xf32>
    %9 = arith.divf %7, %8 : vector<8x1xf32>
    %cst_4 = arith.constant 9.99999974E-6 : f32
    %10 = vector.broadcast %cst_4 : f32 to vector<8x1xf32>
    %11 = arith.addf %9, %10 : vector<8x1xf32>
    %12 = math.rsqrt %11 : vector<8x1xf32>
    %13 = vector.broadcast %12 : vector<8x1xf32> to vector<8x32xf32>
    %14 = arith.mulf %4, %13 : vector<8x32xf32>
    %c0_5 = arith.constant 0 : index
    %c0_6 = arith.constant 0 : index
    %15 = vector.load %arg3[%c0_5, %c0_6] : memref<1x32xf32, #tpu.memory_space<vmem>>, vector<1x32xf32>
    %16 = vector.broadcast %15 : vector<1x32xf32> to vector<8x32xf32>
    %17 = arith.mulf %14, %16 : vector<8x32xf32>
    %18 = arith.truncf %17 : vector<8x32xf32> to vector<8x32xbf16>
    %c0_7 = arith.constant 0 : index
    %c0_8 = arith.constant 0 : index
    %19 = vector.load %arg4[%c0_7, %c0_8] : memref<32x160xbf16, #tpu.memory_space<vmem>>, vector<32x160xbf16>
    %cst_9 = arith.constant dense<0.000000e+00> : vector<8x160xf32>
    %20 = tpu.matmul %18, %19, %cst_9 {dimension_numbers = #tpu.dot_dimension_numbers<[1], [0], [0], [1], [0, 0, 1, 1], [], []>} : vector<8x32xbf16>, vector<32x160xbf16>, vector<8x160xf32> -> vector<8x160xf32>
    %21 = vector.extract_strided_slice %20 {offsets = [0, 0], sizes = [8, 64], strides = [1, 1]} : vector<8x160xf32> to vector<8x64xf32>
    %22 = vector.extract_strided_slice %20 {offsets = [0, 64], sizes = [8, 96], strides = [1, 1]} : vector<8x160xf32> to vector<8x96xf32>
    %c0_10 = arith.constant 0 : index
    %c0_11 = arith.constant 0 : index
    %23 = vector.load %arg5[%c0_10, %c0_11] : memref<32x64xf32, #tpu.memory_space<vmem>>, vector<32x64xf32>
    %cst_12 = arith.constant dense<0.000000e+00> : vector<8x64xf32>
    %24 = tpu.matmul %17, %23, %cst_12 {dimension_numbers = #tpu.dot_dimension_numbers<[1], [0], [0], [1], [0, 0, 1, 1], [], []>} : vector<8x32xf32>, vector<32x64xf32>, vector<8x64xf32> -> vector<8x64xf32>
    %c3 = arith.constant 3 : index
    %c0_13 = arith.constant 0 : index
    %25 = vector.load %arg15[%c3, %c0_13] : memref<11x96xf32, #tpu.memory_space<vmem>>, vector<8x96xf32>
    tpu.vector_store %arg15[%c3, %c0_13], %22 {strides = array<i32>} : memref<11x96xf32, #tpu.memory_space<vmem>>, vector<8x96xf32>,
    %c0_14 = arith.constant 0 : index
    %c0_15 = arith.constant 0 : index
    %26 = vector.load %arg15[%c0_14, %c0_15] : memref<11x96xf32, #tpu.memory_space<vmem>>, vector<11x96xf32>
    %cst_16 = arith.constant 0.000000e+00 : f32
    %27 = vector.broadcast %cst_16 : f32 to vector<8x96xf32>
    %c0_17 = arith.constant 0 : index
    %c0_18 = arith.constant 0 : index
    %28 = vector.load %arg7[%c0_17, %c0_18] : memref<1x96xf32, #tpu.memory_space<vmem>>, vector<1x96xf32>
    %29 = vector.broadcast %28 : vector<1x96xf32> to vector<8x96xf32>
    %30 = arith.addf %27, %29 : vector<8x96xf32>
    %31 = vector.extract_strided_slice %26 {offsets = [0, 0], sizes = [8, 96], strides = [1, 1]} : vector<11x96xf32> to vector<8x96xf32>
    %c0_19 = arith.constant 0 : index
    %c0_20 = arith.constant 0 : index
    %32 = vector.load %arg6[%c0_19, %c0_20] : memref<4x96xf32, #tpu.memory_space<vmem>>, vector<1x96xf32>
    %33 = vector.broadcast %32 : vector<1x96xf32> to vector<8x96xf32>
    %34 = arith.mulf %31, %33 : vector<8x96xf32>
    %35 = arith.addf %30, %34 : vector<8x96xf32>
    %36 = vector.extract_strided_slice %26 {offsets = [1, 0], sizes = [8, 96], strides = [1, 1]} : vector<11x96xf32> to vector<8x96xf32>
    %c1 = arith.constant 1 : index
    %c0_21 = arith.constant 0 : index
    %37 = vector.load %arg6[%c1, %c0_21] : memref<4x96xf32, #tpu.memory_space<vmem>>, vector<1x96xf32>
    %38 = vector.broadcast %37 : vector<1x96xf32> to vector<8x96xf32>
    %39 = arith.mulf %36, %38 : vector<8x96xf32>
    %40 = arith.addf %35, %39 : vector<8x96xf32>
    %41 = vector.extract_strided_slice %26 {offsets = [2, 0], sizes = [8, 96], strides = [1, 1]} : vector<11x96xf32> to vector<8x96xf32>
    %c2 = arith.constant 2 : index
    %c0_22 = arith.constant 0 : index
    %42 = vector.load %arg6[%c2, %c0_22] : memref<4x96xf32, #tpu.memory_space<vmem>>, vector<1x96xf32>
    %43 = vector.broadcast %42 : vector<1x96xf32> to vector<8x96xf32>
    %44 = arith.mulf %41, %43 : vector<8x96xf32>
    %45 = arith.addf %40, %44 : vector<8x96xf32>
    %46 = vector.extract_strided_slice %26 {offsets = [3, 0], sizes = [8, 96], strides = [1, 1]} : vector<11x96xf32> to vector<8x96xf32>
    %c3_23 = arith.constant 3 : index
    %c0_24 = arith.constant 0 : index
    %47 = vector.load %arg6[%c3_23, %c0_24] : memref<4x96xf32, #tpu.memory_space<vmem>>, vector<1x96xf32>
    %48 = vector.broadcast %47 : vector<1x96xf32> to vector<8x96xf32>
    %49 = arith.mulf %46, %48 : vector<8x96xf32>
    %50 = arith.addf %45, %49 : vector<8x96xf32>
    %51 = vector.extract_strided_slice %26 {offsets = [8, 0], sizes = [3, 96], strides = [1, 1]} : vector<11x96xf32> to vector<3x96xf32>
    %c0_25 = arith.constant 0 : index
    %c0_26 = arith.constant 0 : index
    %52 = vector.load %arg15[%c0_25, %c0_26] : memref<11x96xf32, #tpu.memory_space<vmem>>, vector<3x96xf32>
    tpu.vector_store %arg15[%c0_25, %c0_26], %51 {strides = array<i32>} : memref<11x96xf32, #tpu.memory_space<vmem>>, vector<3x96xf32>,
    %cst_27 = arith.constant 0.000000e+00 : f32
    %53 = vector.broadcast %cst_27 : f32 to vector<8x96xf32>
    %54 = arith.subf %53, %50 : vector<8x96xf32>
    %55 = math.exp %54 : vector<8x96xf32>
    %cst_28 = arith.constant 1.000000e+00 : f32
    %56 = vector.broadcast %cst_28 : f32 to vector<8x96xf32>
    %57 = arith.addf %56, %55 : vector<8x96xf32>
    %cst_29 = arith.constant 1.000000e+00 : f32
    %58 = vector.broadcast %cst_29 : f32 to vector<8x96xf32>
    %59 = arith.divf %58, %57 : vector<8x96xf32>
    %60 = arith.mulf %50, %59 : vector<8x96xf32>
    %61 = vector.extract_strided_slice %60 {offsets = [0, 0], sizes = [8, 64], strides = [1, 1]} : vector<8x96xf32> to vector<8x64xf32>
    %62 = vector.extract_strided_slice %60 {offsets = [0, 64], sizes = [8, 16], strides = [1, 1]} : vector<8x96xf32> to vector<8x16xf32>
    %63 = vector.extract_strided_slice %60 {offsets = [0, 80], sizes = [8, 16], strides = [1, 1]} : vector<8x96xf32> to vector<8x16xf32>
    %c0_30 = arith.constant 0 : index
    %c0_31 = arith.constant 0 : index
    %64 = vector.load %arg8[%c0_30, %c0_31] : memref<1x64xf32, #tpu.memory_space<vmem>>, vector<1x64xf32>
    %65 = vector.broadcast %64 : vector<1x64xf32> to vector<8x64xf32>
    %66 = arith.addf %24, %65 : vector<8x64xf32>
    %cst_32 = arith.constant 2.000000e+01 : f32
    %67 = vector.broadcast %cst_32 : f32 to vector<8x64xf32>
    %68 = arith.cmpf ogt, %66, %67 : vector<8x64xf32>
    %cst_33 = arith.constant 2.000000e+01 : f32
    %69 = vector.broadcast %cst_33 : f32 to vector<8x64xf32>
    %70 = arith.minimumf %66, %69 : vector<8x64xf32>
    %71 = math.exp %70 : vector<8x64xf32>
    %72 = math.log1p %71 : vector<8x64xf32>
    %73 = arith.select %68, %66, %72 : vector<8x64xi1>, vector<8x64xf32>
    %cst_34 = arith.constant 0.000000e+00 : f32
    %cst_35 = arith.constant 1.000000e+02 : f32
    %74 = vector.broadcast %cst_34 : f32 to vector<8x64xf32>
    %75 = arith.maximumf %74, %73 : vector<8x64xf32>
    %76 = vector.broadcast %cst_35 : f32 to vector<8x64xf32>
    %77 = arith.minimumf %76, %75 : vector<8x64xf32>
    %c0_36 = arith.constant 0 : index
    %c0_37 = arith.constant 0 : index
    %78 = vector.load %arg9[%c0_36, %c0_37] : memref<1x64xf32, #tpu.memory_space<vmem>>, vector<1x64xf32>
    %79 = vector.broadcast %78 : vector<1x64xf32> to vector<8x64xf32>
    %80 = arith.mulf %77, %79 : vector<8x64xf32>
    %81 = arith.mulf %61, %77 : vector<8x64xf32>
    %82 = tpu.iota {dimensions = array<i32: 0>} : vector<8x8xi32>
    %83 = tpu.iota {dimensions = array<i32: 1>} : vector<8x8xi32>
    %84 = arith.cmpi sge, %82, %83 : vector<8x8xi32>
    %85 = arith.extui %84 : vector<8x8xi1> to vector<8x8xi32>
    %86 = arith.sitofp %85 : vector<8x8xi32> to vector<8x8xf32>
    %cst_38 = arith.constant dense<0.000000e+00> : vector<8x64xf32>
    %87 = tpu.matmul %86, %80, %cst_38 {dimension_numbers = #tpu.dot_dimension_numbers<[1], [0], [0], [1], [0, 0, 1, 1], [], []>} : vector<8x8xf32>, vector<8x64xf32>, vector<8x64xf32> -> vector<8x64xf32>
    %88 = vector.extract_strided_slice %87 {offsets = [7, 0], sizes = [1, 64], strides = [1, 1]} : vector<8x64xf32> to vector<1x64xf32>
    %89 = math.exp %87 : vector<8x64xf32>
    %90 = vector.broadcast %88 : vector<1x64xf32> to vector<8x64xf32>
    %91 = arith.subf %90, %87 : vector<8x64xf32>
    %92 = math.exp %91 : vector<8x64xf32>
    %93 = arith.mulf %81, %92 : vector<8x64xf32>
    %94 = arith.truncf %63 : vector<8x16xf32> to vector<8x16xbf16>
    %c0_39 = arith.constant 0 : index
    %c0_40 = arith.constant 0 : index
    %95 = vector.load %arg14[%c0_39, %c0_40] : memref<16x64xf32, #tpu.memory_space<vmem>>, vector<16x64xf32>
    %96 = arith.truncf %95 : vector<16x64xf32> to vector<16x64xbf16>
    %cst_41 = arith.constant dense<0.000000e+00> : vector<8x64xf32>
    %97 = tpu.matmul %94, %96, %cst_41 {dimension_numbers = #tpu.dot_dimension_numbers<[1], [0], [0], [1], [0, 0, 1, 1], [], []>} : vector<8x16xbf16>, vector<16x64xbf16>, vector<8x64xf32> -> vector<8x64xf32>
    %98 = arith.mulf %89, %97 : vector<8x64xf32>
    %99 = arith.truncf %63 : vector<8x16xf32> to vector<8x16xbf16>
    %100 = arith.truncf %62 : vector<8x16xf32> to vector<8x16xbf16>
    %cst_42 = arith.constant dense<0.000000e+00> : vector<8x8xf32>
    %101 = tpu.matmul %99, %100, %cst_42 {dimension_numbers = #tpu.dot_dimension_numbers<[1], [1], [0], [0], [0, 0, 1, 0], [], []>} : vector<8x16xbf16>, vector<8x16xbf16>, vector<8x8xf32> -> vector<8x8xf32>
    %102 = tpu.iota {dimensions = array<i32: 1>} : vector<1x64xi32>
    %103 = vector.extract_strided_slice %87 {offsets = [0, 0], sizes = [8, 1], strides = [1, 1]} : vector<8x64xf32> to vector<8x1xf32>
    %104 = vector.shape_cast %103 : vector<8x1xf32> to vector<1x8xf32>
    %105 = vector.broadcast %103 : vector<8x1xf32> to vector<8x8xf32>
    %106 = vector.broadcast %104 : vector<1x8xf32> to vector<8x8xf32>
    %107 = arith.subf %105, %106 : vector<8x8xf32>
    %cst_43 = arith.constant 0.000000e+00 : f32
    %108 = vector.broadcast %cst_43 : f32 to vector<8x8xf32>
    %109 = arith.minimumf %107, %108 : vector<8x8xf32>
    %110 = math.exp %109 : vector<8x8xf32>
    %cst_44 = arith.constant 0.000000e+00 : f32
    %111 = vector.broadcast %cst_44 : f32 to vector<8x8xf32>
    %112 = arith.select %84, %110, %111 : vector<8x8xi1>, vector<8x8xf32>
    %c0_i32_45 = arith.constant 0 : i32
    %113 = vector.broadcast %c0_i32_45 : i32 to vector<1x64xi32>
    %114 = arith.cmpi sge, %102, %113 : vector<1x64xi32>
    %c16_i32 = arith.constant 16 : i32
    %115 = vector.broadcast %c16_i32 : i32 to vector<1x64xi32>
    %116 = arith.cmpi slt, %102, %115 : vector<1x64xi32>
    %117 = arith.andi %114, %116 : vector<1x64xi1>
    %118 = arith.extui %117 : vector<1x64xi1> to vector<1x64xi32>
    %119 = arith.sitofp %118 : vector<1x64xi32> to vector<1x64xf32>
    %120 = vector.broadcast %119 : vector<1x64xf32> to vector<8x64xf32>
    %121 = arith.mulf %81, %120 : vector<8x64xf32>
    %122 = arith.mulf %101, %112 : vector<8x8xf32>
    %123 = arith.truncf %122 : vector<8x8xf32> to vector<8x8xbf16>
    %124 = arith.truncf %121 : vector<8x64xf32> to vector<8x64xbf16>
    %cst_46 = arith.constant dense<0.000000e+00> : vector<8x64xf32>
    %125 = tpu.matmul %123, %124, %cst_46 {dimension_numbers = #tpu.dot_dimension_numbers<[1], [0], [0], [1], [0, 0, 1, 1], [], []>} : vector<8x8xbf16>, vector<8x64xbf16>, vector<8x64xf32> -> vector<8x64xf32>
    %126 = arith.addf %98, %125 : vector<8x64xf32>
    %127 = vector.extract_strided_slice %87 {offsets = [0, 16], sizes = [8, 1], strides = [1, 1]} : vector<8x64xf32> to vector<8x1xf32>
    %128 = vector.shape_cast %127 : vector<8x1xf32> to vector<1x8xf32>
    %129 = vector.broadcast %127 : vector<8x1xf32> to vector<8x8xf32>
    %130 = vector.broadcast %128 : vector<1x8xf32> to vector<8x8xf32>
    %131 = arith.subf %129, %130 : vector<8x8xf32>
    %cst_47 = arith.constant 0.000000e+00 : f32
    %132 = vector.broadcast %cst_47 : f32 to vector<8x8xf32>
    %133 = arith.minimumf %131, %132 : vector<8x8xf32>
    %134 = math.exp %133 : vector<8x8xf32>
    %cst_48 = arith.constant 0.000000e+00 : f32
    %135 = vector.broadcast %cst_48 : f32 to vector<8x8xf32>
    %136 = arith.select %84, %134, %135 : vector<8x8xi1>, vector<8x8xf32>
    %c16_i32_49 = arith.constant 16 : i32
    %137 = vector.broadcast %c16_i32_49 : i32 to vector<1x64xi32>
    %138 = arith.cmpi sge, %102, %137 : vector<1x64xi32>
    %c32_i32 = arith.constant 32 : i32
    %139 = vector.broadcast %c32_i32 : i32 to vector<1x64xi32>
    %140 = arith.cmpi slt, %102, %139 : vector<1x64xi32>
    %141 = arith.andi %138, %140 : vector<1x64xi1>
    %142 = arith.extui %141 : vector<1x64xi1> to vector<1x64xi32>
    %143 = arith.sitofp %142 : vector<1x64xi32> to vector<1x64xf32>
    %144 = vector.broadcast %143 : vector<1x64xf32> to vector<8x64xf32>
    %145 = arith.mulf %81, %144 : vector<8x64xf32>
    %146 = arith.mulf %101, %136 : vector<8x8xf32>
    %147 = arith.truncf %146 : vector<8x8xf32> to vector<8x8xbf16>
    %148 = arith.truncf %145 : vector<8x64xf32> to vector<8x64xbf16>
    %cst_50 = arith.constant dense<0.000000e+00> : vector<8x64xf32>
    %149 = tpu.matmul %147, %148, %cst_50 {dimension_numbers = #tpu.dot_dimension_numbers<[1], [0], [0], [1], [0, 0, 1, 1], [], []>} : vector<8x8xbf16>, vector<8x64xbf16>, vector<8x64xf32> -> vector<8x64xf32>
    %150 = arith.addf %126, %149 : vector<8x64xf32>
    %151 = vector.extract_strided_slice %87 {offsets = [0, 32], sizes = [8, 1], strides = [1, 1]} : vector<8x64xf32> to vector<8x1xf32>
    %152 = vector.shape_cast %151 : vector<8x1xf32> to vector<1x8xf32>
    %153 = vector.broadcast %151 : vector<8x1xf32> to vector<8x8xf32>
    %154 = vector.broadcast %152 : vector<1x8xf32> to vector<8x8xf32>
    %155 = arith.subf %153, %154 : vector<8x8xf32>
    %cst_51 = arith.constant 0.000000e+00 : f32
    %156 = vector.broadcast %cst_51 : f32 to vector<8x8xf32>
    %157 = arith.minimumf %155, %156 : vector<8x8xf32>
    %158 = math.exp %157 : vector<8x8xf32>
    %cst_52 = arith.constant 0.000000e+00 : f32
    %159 = vector.broadcast %cst_52 : f32 to vector<8x8xf32>
    %160 = arith.select %84, %158, %159 : vector<8x8xi1>, vector<8x8xf32>
    %c32_i32_53 = arith.constant 32 : i32
    %161 = vector.broadcast %c32_i32_53 : i32 to vector<1x64xi32>
    %162 = arith.cmpi sge, %102, %161 : vector<1x64xi32>
    %c48_i32 = arith.constant 48 : i32
    %163 = vector.broadcast %c48_i32 : i32 to vector<1x64xi32>
    %164 = arith.cmpi slt, %102, %163 : vector<1x64xi32>
    %165 = arith.andi %162, %164 : vector<1x64xi1>
    %166 = arith.extui %165 : vector<1x64xi1> to vector<1x64xi32>
    %167 = arith.sitofp %166 : vector<1x64xi32> to vector<1x64xf32>
    %168 = vector.broadcast %167 : vector<1x64xf32> to vector<8x64xf32>
    %169 = arith.mulf %81, %168 : vector<8x64xf32>
    %170 = arith.mulf %101, %160 : vector<8x8xf32>
    %171 = arith.truncf %170 : vector<8x8xf32> to vector<8x8xbf16>
    %172 = arith.truncf %169 : vector<8x64xf32> to vector<8x64xbf16>
    %cst_54 = arith.constant dense<0.000000e+00> : vector<8x64xf32>
    %173 = tpu.matmul %171, %172, %cst_54 {dimension_numbers = #tpu.dot_dimension_numbers<[1], [0], [0], [1], [0, 0, 1, 1], [], []>} : vector<8x8xbf16>, vector<8x64xbf16>, vector<8x64xf32> -> vector<8x64xf32>
    %174 = arith.addf %150, %173 : vector<8x64xf32>
    %175 = vector.extract_strided_slice %87 {offsets = [0, 48], sizes = [8, 1], strides = [1, 1]} : vector<8x64xf32> to vector<8x1xf32>
    %176 = vector.shape_cast %175 : vector<8x1xf32> to vector<1x8xf32>
    %177 = vector.broadcast %175 : vector<8x1xf32> to vector<8x8xf32>
    %178 = vector.broadcast %176 : vector<1x8xf32> to vector<8x8xf32>
    %179 = arith.subf %177, %178 : vector<8x8xf32>
    %cst_55 = arith.constant 0.000000e+00 : f32
    %180 = vector.broadcast %cst_55 : f32 to vector<8x8xf32>
    %181 = arith.minimumf %179, %180 : vector<8x8xf32>
    %182 = math.exp %181 : vector<8x8xf32>
    %cst_56 = arith.constant 0.000000e+00 : f32
    %183 = vector.broadcast %cst_56 : f32 to vector<8x8xf32>
    %184 = arith.select %84, %182, %183 : vector<8x8xi1>, vector<8x8xf32>
    %c48_i32_57 = arith.constant 48 : i32
    %185 = vector.broadcast %c48_i32_57 : i32 to vector<1x64xi32>
    %186 = arith.cmpi sge, %102, %185 : vector<1x64xi32>
    %c64_i32 = arith.constant 64 : i32
    %187 = vector.broadcast %c64_i32 : i32 to vector<1x64xi32>
    %188 = arith.cmpi slt, %102, %187 : vector<1x64xi32>
    %189 = arith.andi %186, %188 : vector<1x64xi1>
    %190 = arith.extui %189 : vector<1x64xi1> to vector<1x64xi32>
    %191 = arith.sitofp %190 : vector<1x64xi32> to vector<1x64xf32>
    %192 = vector.broadcast %191 : vector<1x64xf32> to vector<8x64xf32>
    %193 = arith.mulf %81, %192 : vector<8x64xf32>
    %194 = arith.mulf %101, %184 : vector<8x8xf32>
    %195 = arith.truncf %194 : vector<8x8xf32> to vector<8x8xbf16>
    %196 = arith.truncf %193 : vector<8x64xf32> to vector<8x64xbf16>
    %cst_58 = arith.constant dense<0.000000e+00> : vector<8x64xf32>
    %197 = tpu.matmul %195, %196, %cst_58 {dimension_numbers = #tpu.dot_dimension_numbers<[1], [0], [0], [1], [0, 0, 1, 1], [], []>} : vector<8x8xbf16>, vector<8x64xbf16>, vector<8x64xf32> -> vector<8x64xf32>
    %198 = arith.addf %174, %197 : vector<8x64xf32>
    %199 = arith.truncf %62 : vector<8x16xf32> to vector<8x16xbf16>
    %200 = arith.truncf %93 : vector<8x64xf32> to vector<8x64xbf16>
    %cst_59 = arith.constant dense<0.000000e+00> : vector<16x64xf32>
    %201 = tpu.matmul %199, %200, %cst_59 {dimension_numbers = #tpu.dot_dimension_numbers<[0], [0], [1], [1], [0, 1, 1, 1], [], []>} : vector<8x16xbf16>, vector<8x64xbf16>, vector<16x64xf32> -> vector<16x64xf32>
    %202 = math.exp %88 : vector<1x64xf32>
    %c0_60 = arith.constant 0 : index
    %c0_61 = arith.constant 0 : index
    %203 = vector.load %arg14[%c0_60, %c0_61] : memref<16x64xf32, #tpu.memory_space<vmem>>, vector<16x64xf32>
    %204 = vector.broadcast %202 : vector<1x64xf32> to vector<16x64xf32>
    %205 = arith.mulf %204, %203 : vector<16x64xf32>
    %206 = arith.addf %205, %201 : vector<16x64xf32>
    %c0_62 = arith.constant 0 : index
    %c0_63 = arith.constant 0 : index
    %207 = vector.load %arg14[%c0_62, %c0_63] : memref<16x64xf32, #tpu.memory_space<vmem>>, vector<16x64xf32>
    tpu.vector_store %arg14[%c0_62, %c0_63], %206 {strides = array<i32>} : memref<16x64xf32, #tpu.memory_space<vmem>>, vector<16x64xf32>,
    %c0_64 = arith.constant 0 : index
    %c0_65 = arith.constant 0 : index
    %208 = vector.load %arg10[%c0_64, %c0_65] : memref<1x64xf32, #tpu.memory_space<vmem>>, vector<1x64xf32>
    %209 = vector.broadcast %208 : vector<1x64xf32> to vector<8x64xf32>
    %210 = arith.mulf %61, %209 : vector<8x64xf32>
    %211 = arith.addf %198, %210 : vector<8x64xf32>
    %cst_66 = arith.constant 0.000000e+00 : f32
    %212 = vector.broadcast %cst_66 : f32 to vector<8x64xf32>
    %213 = arith.subf %212, %21 : vector<8x64xf32>
    %214 = math.exp %213 : vector<8x64xf32>
    %cst_67 = arith.constant 1.000000e+00 : f32
    %215 = vector.broadcast %cst_67 : f32 to vector<8x64xf32>
    %216 = arith.addf %215, %214 : vector<8x64xf32>
    %cst_68 = arith.constant 1.000000e+00 : f32
    %217 = vector.broadcast %cst_68 : f32 to vector<8x64xf32>
    %218 = arith.divf %217, %216 : vector<8x64xf32>
    %219 = arith.mulf %21, %218 : vector<8x64xf32>
    %220 = arith.mulf %211, %219 : vector<8x64xf32>
    %221 = arith.mulf %220, %220 : vector<8x64xf32>
    %cst_69 = arith.constant dense<0.000000e+00> : vector<8xf32>
    %222 = vector.multi_reduction <add>, %221, %cst_69 [1] : vector<8x64xf32> to vector<8xf32>
    %223 = vector.shape_cast %222 : vector<8xf32> to vector<8x1xf32>
    %cst_70 = arith.constant 6.400000e+01 : f32
    %224 = vector.broadcast %cst_70 : f32 to vector<8x1xf32>
    %225 = arith.divf %223, %224 : vector<8x1xf32>
    %cst_71 = arith.constant 9.99999974E-6 : f32
    %226 = vector.broadcast %cst_71 : f32 to vector<8x1xf32>
    %227 = arith.addf %225, %226 : vector<8x1xf32>
    %228 = math.rsqrt %227 : vector<8x1xf32>
    %229 = vector.broadcast %228 : vector<8x1xf32> to vector<8x64xf32>
    %230 = arith.mulf %220, %229 : vector<8x64xf32>
    %c0_72 = arith.constant 0 : index
    %c0_73 = arith.constant 0 : index
    %231 = vector.load %arg11[%c0_72, %c0_73] : memref<1x64xf32, #tpu.memory_space<vmem>>, vector<1x64xf32>
    %232 = vector.broadcast %231 : vector<1x64xf32> to vector<8x64xf32>
    %233 = arith.mulf %230, %232 : vector<8x64xf32>
    %234 = arith.truncf %233 : vector<8x64xf32> to vector<8x64xbf16>
    %c0_74 = arith.constant 0 : index
    %c0_75 = arith.constant 0 : index
    %235 = vector.load %arg12[%c0_74, %c0_75] : memref<64x32xbf16, #tpu.memory_space<vmem>>, vector<64x32xbf16>
    %cst_76 = arith.constant dense<0.000000e+00> : vector<8x32xf32>
    %236 = tpu.matmul %234, %235, %cst_76 {dimension_numbers = #tpu.dot_dimension_numbers<[1], [0], [0], [1], [0, 0, 1, 1], [], []>} : vector<8x64xbf16>, vector<64x32xbf16>, vector<8x32xf32> -> vector<8x32xf32>
    %237 = arith.addf %4, %236 : vector<8x32xf32>
    %c0_77 = arith.constant 0 : index
    %c0_78 = arith.constant 0 : index
    %c0_79 = arith.constant 0 : index
    %238 = vector.load %arg13[%c0_77, %c0_78, %c0_79] : memref<1x8x32xf32, #tpu.memory_space<vmem>>, vector<1x8x32xf32>
    %239 = vector.shape_cast %238 : vector<1x8x32xf32> to vector<8x32xf32>
    %240 = vector.shape_cast %237 : vector<8x32xf32> to vector<1x8x32xf32>
    tpu.vector_store %arg13[%c0_77, %c0_78, %c0_79], %240 {strides = array<i32>} : memref<1x8x32xf32, #tpu.memory_space<vmem>>, vector<1x8x32xf32>,
    return
  }
  func.func @transform_0(%arg0: i32, %arg1: i32) -> (i32, i32, i32) {
    %c0_i32 = arith.constant 0 : i32
    %c0_i32_0 = arith.constant 0 : i32
    return %arg0, %arg1, %c0_i32 : i32, i32, i32
  }
  func.func @transform_1(%arg0: i32, %arg1: i32) -> (i32, i32) {
    %c0_i32 = arith.constant 0 : i32
    %c0_i32_0 = arith.constant 0 : i32
    %c0_i32_1 = arith.constant 0 : i32
    return %c0_i32, %c0_i32_0 : i32, i32
  }
  func.func @transform_2(%arg0: i32, %arg1: i32) -> (i32, i32) {
    %c0_i32 = arith.constant 0 : i32
    %c0_i32_0 = arith.constant 0 : i32
    %c0_i32_1 = arith.constant 0 : i32
    return %c0_i32, %c0_i32_0 : i32, i32
  }
  func.func @transform_3(%arg0: i32, %arg1: i32) -> (i32, i32) {
    %c0_i32 = arith.constant 0 : i32
    %c0_i32_0 = arith.constant 0 : i32
    %c0_i32_1 = arith.constant 0 : i32
    return %c0_i32, %c0_i32_0 : i32, i32
  }
  func.func @transform_4(%arg0: i32, %arg1: i32) -> (i32, i32) {
    %c0_i32 = arith.constant 0 : i32
    %c0_i32_0 = arith.constant 0 : i32
    %c0_i32_1 = arith.constant 0 : i32
    return %c0_i32, %c0_i32_0 : i32, i32
  }
  func.func @transform_5(%arg0: i32, %arg1: i32) -> (i32, i32) {
    %c0_i32 = arith.constant 0 : i32
    %c0_i32_0 = arith.constant 0 : i32
    %c0_i32_1 = arith.constant 0 : i32
    return %c0_i32, %c0_i32_0 : i32, i32
  }
  func.func @transform_6(%arg0: i32, %arg1: i32) -> (i32, i32) {
    %c0_i32 = arith.constant 0 : i32
    %c0_i32_0 = arith.constant 0 : i32
    %c0_i32_1 = arith.constant 0 : i32
    return %c0_i32, %c0_i32_0 : i32, i32
  }
  func.func @transform_7(%arg0: i32, %arg1: i32) -> (i32, i32) {
    %c0_i32 = arith.constant 0 : i32
    %c0_i32_0 = arith.constant 0 : i32
    %c0_i32_1 = arith.constant 0 : i32
    return %c0_i32, %c0_i32_0 : i32, i32
  }
  func.func @transform_8(%arg0: i32, %arg1: i32) -> (i32, i32) {
    %c0_i32 = arith.constant 0 : i32
    %c0_i32_0 = arith.constant 0 : i32
    %c0_i32_1 = arith.constant 0 : i32
    return %c0_i32, %c0_i32_0 : i32, i32
  }
  func.func @transform_9(%arg0: i32, %arg1: i32) -> (i32, i32) {
    %c0_i32 = arith.constant 0 : i32
    %c0_i32_0 = arith.constant 0 : i32
    %c0_i32_1 = arith.constant 0 : i32
    return %c0_i32, %c0_i32_0 : i32, i32
  }
  func.func @transform_10(%arg0: i32, %arg1: i32) -> (i32, i32) {
    %c0_i32 = arith.constant 0 : i32
    %c0_i32_0 = arith.constant 0 : i32
    %c0_i32_1 = arith.constant 0 : i32
    return %c0_i32, %c0_i32_0 : i32, i32
  }
  func.func @transform_11(%arg0: i32, %arg1: i32) -> (i32, i32, i32) {
    %c0_i32 = arith.constant 0 : i32
    %c0_i32_0 = arith.constant 0 : i32
    return %arg0, %arg1, %c0_i32 : i32, i32, i32
  }
}

</mosaic_0001>

<llo_original>
// kernel: tpu_custom_call.1
$region0: #{tpu_custom_call.1}
  #allocation0 [shape = 'u32[]', space=smem, size = 0x4, offset = 0x4, fixed_abs, tag = 'smem constant byte address 0x4 - core index']
  #allocation1 [shape = 'u32[144,128]{1,0:T(1,128)}', space=vmem, size = 0x12000, scoped, tag = 'internal scratch']
  #allocation2 [shape = 'f32[16,64]{1,0:T(8,128)}', space=vmem, size = 0x2000, scoped, tag = 'scratch operand']
  #allocation3 [shape = 'f32[11,96]{1,0:T(8,128)}', space=vmem, size = 0x2000, scoped, tag = 'scratch operand']
  %s0 = inlined_call_operand.vmem [shape: f32[2,16,32], index: 0, kind: input, shape index: {}]
  %s1 = inlined_call_operand.vmem [shape: f32[1,32], index: 1, kind: input, shape index: {}]
  %s2 = inlined_call_operand.hbm [shape: bf16[32,160], index: 2, kind: input, shape index: {}]
  %s3 = inlined_call_operand.hbm [shape: f32[32,64], index: 3, kind: input, shape index: {}]
  %s4 = inlined_call_operand.vmem [shape: f32[4,96], index: 4, kind: input, shape index: {}]
  %s5 = inlined_call_operand.vmem [shape: f32[1,96], index: 5, kind: input, shape index: {}]
  %s6 = inlined_call_operand.vmem [shape: f32[1,64], index: 6, kind: input, shape index: {}]
  %s7 = inlined_call_operand.vmem [shape: f32[1,64], index: 7, kind: input, shape index: {}]
  %s8 = inlined_call_operand.vmem [shape: f32[1,64], index: 8, kind: input, shape index: {}]
  %s9 = inlined_call_operand.vmem [shape: f32[1,64], index: 9, kind: input, shape index: {}]
  %s10 = inlined_call_operand.vmem [shape: bf16[64,32], index: 10, kind: input, shape index: {}]
  %s11 = inlined_call_operand.hbm [shape: f32[2,16,32], index: 11, kind: output, shape index: {}]
  %s12 = sld [smem:[#allocation0]]
  $region89: #{tpu_custom_call.1} parent=0
    _
  %s14 = ssub.s32 1, %s12
  %s15 = scalar_select 0, %s14, %s12
  $region1: #{tpu_custom_call.1} parent=0
    #allocation4 [shape = 'u8[16384]{0}', space=vmem, size = 0x4000, scoped, tag = 'input window, operand 2, single buffered']
    #allocation5 [shape = 's32[2]{0}', space=sflag, size = 0x8, scoped, tag = 'scoped memory for tpu_custom_call.1']
    #allocation6 [shape = 's32[2]{0}', space=sflag, size = 0x8, scoped, tag = 'scoped memory for tpu_custom_call.1']
    #allocation7 [shape = 'u8[16384]{0}', space=vmem, size = 0x4000, scoped, tag = 'input window, operand 3, single buffered']
    #allocation8 [shape = 's32[1]{0}', space=sflag, size = 0x4, scoped, tag = 'scoped memory for tpu_custom_call.1']
    #allocation9 [shape = 'u8[8192]{0}', space=vmem, size = 0x2000, scoped, tag = 'output window, operand 0']
    %16 = vsyncpa [#allocation5], 0
    %17 = vsyncpa [#allocation8], 0
    %18 = vsyncpa [#allocation6], 0
    %s19 = scalar_lea.sflag [#allocation6], 1
    %20 = vsyncpa %s19, 0
    loop: start=0, step=1, limit=6
    $region2: #{tpu_custom_call.1} parent=1 // loop_pre_header
      _
    $region3: #{tpu_custom_call.1} parent=1 // loop_header
      %s22 = sphi 0, %s26
      %p23 = scmp.ge.s32.totalorder %s22, 6
      %s29 = sphi 0, %s41
      %s30 = sphi 0, %s37
      %s31 = sphi 0, %s29
      %s32 = sphi 0, %s30
      %s33 = sphi 0, %s31
      %s34 = sphi 0, %s32
      %s46 = sphi 0, %s48
      %s49 = sphi 0, %s46
      %s50 = sphi 0, %s49
      %s66 = sphi 0, %s50
      %s70 = sphi 0, %s70
      %s72 = sphi 0, %s70
      %s73 = sphi 0, %s72
      %s87 = sphi 0, %s73
      %s91 = sphi 0, %s91
      %s93 = sphi 0, %s91
      %s94 = sphi 0, %s93
      %s108 = sphi 0, %s94
      %s112 = sphi 0, %s112
      %s114 = sphi 0, %s112
      %s115 = sphi 0, %s114
      %s129 = sphi 0, %s115
      %s133 = sphi 0, %s133
      %s135 = sphi 0, %s133
      %s136 = sphi 0, %s135
      %s150 = sphi 0, %s136
      %s154 = sphi 0, %s154
      %s156 = sphi 0, %s154
      %s157 = sphi 0, %s156
      %s171 = sphi 0, %s157
      %s175 = sphi 0, %s175
      %s177 = sphi 0, %s175
      %s178 = sphi 0, %s177
      %s192 = sphi 0, %s178
      %s196 = sphi 0, %s196
      %s198 = sphi 0, %s196
      %s199 = sphi 0, %s198
      %s213 = sphi 0, %s199
      %s217 = sphi 0, %s217
      %s219 = sphi 0, %s217
      %s220 = sphi 0, %s219
      %s234 = sphi 0, %s220
      %s238 = sphi 0, %s238
      %s240 = sphi 0, %s238
      %s241 = sphi 0, %s240
      %s255 = sphi 0, %s241
      %s259 = sphi 0, %s259
      %s261 = sphi 0, %s259
      %s262 = sphi 0, %s261
      %s276 = sphi 0, %s262
      %s284 = sphi 0, %s286
      %s287 = sphi 0, %s284
      %s288 = sphi 0, %s287
      %s304 = sphi 0, %s288
    $region4: #{tpu_custom_call.1} parent=1 // loop_header_branch
      %25 = sbr.rel (%p23) target = $region8
    $region5: #{tpu_custom_call.1} parent=1 // loop_body
      %s27 = ssub.s32 %s22, 1
      %s28 = ssub.s32 %s22, 2
      %s35 = sadd.s32 1, %s30
      %p36 = scmp.ge.s32.totalorder %s35, 2
      %s37 = scalar_select %p36, 0, %s35
      %s38 = sadd.s32 1, %s29
      %s39 = scalar_select %p36, %s38, %s29
      %p40 = scmp.ge.s32.totalorder %s39, 2
      %s41 = scalar_select %p40, 0, %s39
      %s42 = ssub.s32 %s29, %s41
      %s43 = ssub.s32 %s30, %s37
      %s44 = sor.u32 %s42, %s43
      %p45 = scmp.eq.s32.totalorder %s44, 0
      %s47 = sadd.s32 %s46, 1
      %s48 = scalar_select %p45, %s46, %s47
      %p51 = pneg %p45
      %p52 = scmp.eq.s32.totalorder %s22, 3
      %p53 = por %p51, %p52
      %p54 = scmp.ne.s32.totalorder %s46, %s49
      %p55 = scmp.eq.s32.totalorder %s22, 0
      %p56 = por %p54, %p55
      %p57 = scmp.ne.s32.totalorder %s46, %s49
      %p58 = scmp.eq.s32.totalorder %s27, 3
      %p59 = por %p57, %p58
      %p60 = scmp.ne.s32.totalorder %s49, %s50
      %p61 = scmp.eq.s32.totalorder %s27, 0
      %p62 = por %p60, %p61
      %p63 = scmp.ne.s32.totalorder %s49, %s50
      %p64 = scmp.eq.s32.totalorder %s28, 3
      %p65 = por %p63, %p64
      %p67 = scmp.ne.s32.totalorder %s50, %s66
      %p68 = scmp.eq.s32.totalorder %s28, 0
      %p69 = por %p67, %p68
      %s71 = sadd.s32 %s70, 1
      %p74 = scmp.eq.s32.totalorder %s22, 3
      %p75 = scmp.ne.s32.totalorder %s70, %s72
      %p76 = scmp.eq.s32.totalorder %s22, 0
      %p77 = por %p75, %p76
      %p78 = scmp.ne.s32.totalorder %s70, %s72
      %p79 = scmp.eq.s32.totalorder %s27, 3
      %p80 = por %p78, %p79
      %p81 = scmp.ne.s32.totalorder %s72, %s73
      %p82 = scmp.eq.s32.totalorder %s27, 0
      %p83 = por %p81, %p82
      %p84 = scmp.ne.s32.totalorder %s72, %s73
      %p85 = scmp.eq.s32.totalorder %s28, 3
      %p86 = por %p84, %p85
      %p88 = scmp.ne.s32.totalorder %s73, %s87
      %p89 = scmp.eq.s32.totalorder %s28, 0
      %p90 = por %p88, %p89
      %s92 = sadd.s32 %s91, 1
      %p95 = scmp.eq.s32.totalorder %s22, 3
      %p96 = scmp.ne.s32.totalorder %s91, %s93
      %p97 = scmp.eq.s32.totalorder %s22, 0
      %p98 = por %p96, %p97
      %p99 = scmp.ne.s32.totalorder %s91, %s93
      %p100 = scmp.eq.s32.totalorder %s27, 3
      %p101 = por %p99, %p100
      %p102 = scmp.ne.s32.totalorder %s93, %s94
      %p103 = scmp.eq.s32.totalorder %s27, 0
      %p104 = por %p102, %p103
      %p105 = scmp.ne.s32.totalorder %s93, %s94
      %p106 = scmp.eq.s32.totalorder %s28, 3
      %p107 = por %p105, %p106
      %p109 = scmp.ne.s32.totalorder %s94, %s108
      %p110 = scmp.eq.s32.totalorder %s28, 0
      %p111 = por %p109, %p110
      %s113 = sadd.s32 %s112, 1
      %p116 = scmp.eq.s32.totalorder %s22, 3
      %p117 = scmp.ne.s32.totalorder %s112, %s114
      %p118 = scmp.eq.s32.totalorder %s22, 0
      %p119 = por %p117, %p118
      %p120 = scmp.ne.s32.totalorder %s112, %s114
      %p121 = scmp.eq.s32.totalorder %s27, 3
      %p122 = por %p120, %p121
      %p123 = scmp.ne.s32.totalorder %s114, %s115
      %p124 = scmp.eq.s32.totalorder %s27, 0
      %p125 = por %p123, %p124
      %p126 = scmp.ne.s32.totalorder %s114, %s115
      %p127 = scmp.eq.s32.totalorder %s28, 3
      %p128 = por %p126, %p127
      %p130 = scmp.ne.s32.totalorder %s115, %s129
      %p131 = scmp.eq.s32.totalorder %s28, 0
      %p132 = por %p130, %p131
      %s134 = sadd.s32 %s133, 1
      %p137 = scmp.eq.s32.totalorder %s22, 3
      %p138 = scmp.ne.s32.totalorder %s133, %s135
      %p139 = scmp.eq.s32.totalorder %s22, 0
      %p140 = por %p138, %p139
      %p141 = scmp.ne.s32.totalorder %s133, %s135
      %p142 = scmp.eq.s32.totalorder %s27, 3
      %p143 = por %p141, %p142
      %p144 = scmp.ne.s32.totalorder %s135, %s136
      %p145 = scmp.eq.s32.totalorder %s27, 0
      %p146 = por %p144, %p145
      %p147 = scmp.ne.s32.totalorder %s135, %s136
      %p148 = scmp.eq.s32.totalorder %s28, 3
      %p149 = por %p147, %p148
      %p151 = scmp.ne.s32.totalorder %s136, %s150
      %p152 = scmp.eq.s32.totalorder %s28, 0
      %p153 = por %p151, %p152
      %s155 = sadd.s32 %s154, 1
      %p158 = scmp.eq.s32.totalorder %s22, 3
      %p159 = scmp.ne.s32.totalorder %s154, %s156
      %p160 = scmp.eq.s32.totalorder %s22, 0
      %p161 = por %p159, %p160
      %p162 = scmp.ne.s32.totalorder %s154, %s156
      %p163 = scmp.eq.s32.totalorder %s27, 3
      %p164 = por %p162, %p163
      %p165 = scmp.ne.s32.totalorder %s156, %s157
      %p166 = scmp.eq.s32.totalorder %s27, 0
      %p167 = por %p165, %p166
      %p168 = scmp.ne.s32.totalorder %s156, %s157
      %p169 = scmp.eq.s32.totalorder %s28, 3
      %p170 = por %p168, %p169
      %p172 = scmp.ne.s32.totalorder %s157, %s171
      %p173 = scmp.eq.s32.totalorder %s28, 0
      %p174 = por %p172, %p173
      %s176 = sadd.s32 %s175, 1
      %p179 = scmp.eq.s32.totalorder %s22, 3
      %p180 = scmp.ne.s32.totalorder %s175, %s177
      %p181 = scmp.eq.s32.totalorder %s22, 0
      %p182 = por %p180, %p181
      %p183 = scmp.ne.s32.totalorder %s175, %s177
      %p184 = scmp.eq.s32.totalorder %s27, 3
      %p185 = por %p183, %p184
      %p186 = scmp.ne.s32.totalorder %s177, %s178
      %p187 = scmp.eq.s32.totalorder %s27, 0
      %p188 = por %p186, %p187
      %p189 = scmp.ne.s32.totalorder %s177, %s178
      %p190 = scmp.eq.s32.totalorder %s28, 3
      %p191 = por %p189, %p190
      %p193 = scmp.ne.s32.totalorder %s178, %s192
      %p194 = scmp.eq.s32.totalorder %s28, 0
      %p195 = por %p193, %p194
      %s197 = sadd.s32 %s196, 1
      %p200 = scmp.eq.s32.totalorder %s22, 3
      %p201 = scmp.ne.s32.totalorder %s196, %s198
      %p202 = scmp.eq.s32.totalorder %s22, 0
      %p203 = por %p201, %p202
      %p204 = scmp.ne.s32.totalorder %s196, %s198
      %p205 = scmp.eq.s32.totalorder %s27, 3
      %p206 = por %p204, %p205
      %p207 = scmp.ne.s32.totalorder %s198, %s199
      %p208 = scmp.eq.s32.totalorder %s27, 0
      %p209 = por %p207, %p208
      %p210 = scmp.ne.s32.totalorder %s198, %s199
      %p211 = scmp.eq.s32.totalorder %s28, 3
      %p212 = por %p210, %p211
      %p214 = scmp.ne.s32.totalorder %s199, %s213
      %p215 = scmp.eq.s32.totalorder %s28, 0
      %p216 = por %p214, %p215
      %s218 = sadd.s32 %s217, 1
      %p221 = scmp.eq.s32.totalorder %s22, 3
      %p222 = scmp.ne.s32.totalorder %s217, %s219
      %p223 = scmp.eq.s32.totalorder %s22, 0
      %p224 = por %p222, %p223
      %p225 = scmp.ne.s32.totalorder %s217, %s219
      %p226 = scmp.eq.s32.totalorder %s27, 3
      %p227 = por %p225, %p226
      %p228 = scmp.ne.s32.totalorder %s219, %s220
      %p229 = scmp.eq.s32.totalorder %s27, 0
      %p230 = por %p228, %p229
      %p231 = scmp.ne.s32.totalorder %s219, %s220
      %p232 = scmp.eq.s32.totalorder %s28, 3
      %p233 = por %p231, %p232
      %p235 = scmp.ne.s32.totalorder %s220, %s234
      %p236 = scmp.eq.s32.totalorder %s28, 0
      %p237 = por %p235, %p236
      %s239 = sadd.s32 %s238, 1
      %p242 = scmp.eq.s32.totalorder %s22, 3
      %p243 = scmp.ne.s32.totalorder %s238, %s240
      %p244 = scmp.eq.s32.totalorder %s22, 0
      %p245 = por %p243, %p244
      %p246 = scmp.ne.s32.totalorder %s238, %s240
      %p247 = scmp.eq.s32.totalorder %s27, 3
      %p248 = por %p246, %p247
      %p249 = scmp.ne.s32.totalorder %s240, %s241
      %p250 = scmp.eq.s32.totalorder %s27, 0
      %p251 = por %p249, %p250
      %p252 = scmp.ne.s32.totalorder %s240, %s241
      %p253 = scmp.eq.s32.totalorder %s28, 3
      %p254 = por %p252, %p253
      %p256 = scmp.ne.s32.totalorder %s241, %s255
      %p257 = scmp.eq.s32.totalorder %s28, 0
      %p258 = por %p256, %p257
      %s260 = sadd.s32 %s259, 1
      %p263 = scmp.eq.s32.totalorder %s22, 3
      %p264 = scmp.ne.s32.totalorder %s259, %s261
      %p265 = scmp.eq.s32.totalorder %s22, 0
      %p266 = por %p264, %p265
      %p267 = scmp.ne.s32.totalorder %s259, %s261
      %p268 = scmp.eq.s32.totalorder %s27, 3
      %p269 = por %p267, %p268
      %p270 = scmp.ne.s32.totalorder %s261, %s262
      %p271 = scmp.eq.s32.totalorder %s27, 0
      %p272 = por %p270, %p271
      %p273 = scmp.ne.s32.totalorder %s261, %s262
      %p274 = scmp.eq.s32.totalorder %s28, 3
      %p275 = por %p273, %p274
      %p277 = scmp.ne.s32.totalorder %s262, %s276
      %p278 = scmp.eq.s32.totalorder %s28, 0
      %p279 = por %p277, %p278
      %s280 = ssub.s32 %s29, %s41
      %s281 = ssub.s32 %s30, %s37
      %s282 = sor.u32 %s280, %s281
      %p283 = scmp.eq.s32.totalorder %s282, 0
      %s285 = sadd.s32 %s284, 1
      %s286 = scalar_select %p283, %s284, %s285
      %p289 = pneg %p283
      %p290 = scmp.eq.s32.totalorder %s22, 3
      %p291 = por %p289, %p290
      %p292 = scmp.ne.s32.totalorder %s284, %s287
      %p293 = scmp.eq.s32.totalorder %s22, 0
      %p294 = por %p292, %p293
      %p295 = scmp.ne.s32.totalorder %s284, %s287
      %p296 = scmp.eq.s32.totalorder %s27, 3
      %p297 = por %p295, %p296
      %p298 = scmp.ne.s32.totalorder %s287, %s288
      %p299 = scmp.eq.s32.totalorder %s27, 0
      %p300 = por %p298, %p299
      %p301 = scmp.ne.s32.totalorder %s287, %s288
      %p302 = scmp.eq.s32.totalorder %s28, 3
      %p303 = por %p301, %p302
      %p305 = scmp.ne.s32.totalorder %s288, %s304
      %p306 = scmp.eq.s32.totalorder %s28, 0
      %p307 = por %p305, %p306
      %p308 = scmp.le.s32.totalorder 1, %s22
      %p309 = scmp.lt.s32.totalorder %s22, 5
      %p310 = pnand %p308, %p309
      %p311 = pneg %p310
      // Predicated region
      $region9: #{tpu_custom_call.1} parent=5 // pred_check
        _
      $region10: #{tpu_custom_call.1} parent=5 // pred_check_branch
        %313 = sbr.rel (%p310) target = $region12
      $region11: #{tpu_custom_call.1} parent=5 // pred_region
        %s314 = ssub.s32 %s22, 1
        // Predicated region
        $region13: #{tpu_custom_call.1} parent=11 // pred_check
          %p315 = pneg %p83
        $region14: #{tpu_custom_call.1} parent=11 // pred_check_branch
          %317 = sbr.rel (%p315) target = $region16
        $region15: #{tpu_custom_call.1} parent=11 // pred_region
          _
        $region16: #{tpu_custom_call.1} parent=11 // pred_fallthru
          _
        // Predicated region
        $region17: #{tpu_custom_call.1} parent=11 // pred_check
          %p318 = pneg %p104
        $region18: #{tpu_custom_call.1} parent=11 // pred_check_branch
          %320 = sbr.rel (%p318) target = $region20
        $region19: #{tpu_custom_call.1} parent=11 // pred_region
          %s322 = ssub.s32 512, 512
          %323 = vsyncadd [#allocation5], %s322
          %s324 = sshll.u32 [#allocation4], 4
          %s325 = int_to_ptr.vmem [resolvable:$true] %s324
          %330 = dma.hbm_to_vmem [thread:$0]  %s2, 512, %s325, [#allocation5], 128, 128, 8
        $region20: #{tpu_custom_call.1} parent=11 // pred_fallthru
          _
        // Predicated region
        $region21: #{tpu_custom_call.1} parent=11 // pred_check
          %p331 = pneg %p125
        $region22: #{tpu_custom_call.1} parent=11 // pred_check_branch
          %333 = sbr.rel (%p331) target = $region24
        $region23: #{tpu_custom_call.1} parent=11 // pred_region
          %s335 = ssub.s32 512, 512
          %336 = vsyncadd [#allocation8], %s335
          %s337 = sshll.u32 [#allocation7], 4
          %s338 = int_to_ptr.vmem [resolvable:$true] %s337
          %343 = dma.hbm_to_vmem [thread:$0]  %s3, 512, %s338, [#allocation8], 128, 128, 8
        $region24: #{tpu_custom_call.1} parent=11 // pred_fallthru
          _
        // Predicated region
        $region25: #{tpu_custom_call.1} parent=11 // pred_check
          %p344 = pneg %p146
        $region26: #{tpu_custom_call.1} parent=11 // pred_check_branch
          %346 = sbr.rel (%p344) target = $region28
        $region27: #{tpu_custom_call.1} parent=11 // pred_region
          _
        $region28: #{tpu_custom_call.1} parent=11 // pred_fallthru
          _
        // Predicated region
        $region29: #{tpu_custom_call.1} parent=11 // pred_check
          %p347 = pneg %p167
        $region30: #{tpu_custom_call.1} parent=11 // pred_check_branch
          %349 = sbr.rel (%p347) target = $region32
        $region31: #{tpu_custom_call.1} parent=11 // pred_region
          _
        $region32: #{tpu_custom_call.1} parent=11 // pred_fallthru
          _
        // Predicated region
        $region33: #{tpu_custom_call.1} parent=11 // pred_check
          %p350 = pneg %p188
        $region34: #{tpu_custom_call.1} parent=11 // pred_check_branch
          %352 = sbr.rel (%p350) target = $region36
        $region35: #{tpu_custom_call.1} parent=11 // pred_region
          _
        $region36: #{tpu_custom_call.1} parent=11 // pred_fallthru
          _
        // Predicated region
        $region37: #{tpu_custom_call.1} parent=11 // pred_check
          %p353 = pneg %p209
        $region38: #{tpu_custom_call.1} parent=11 // pred_check_branch
          %355 = sbr.rel (%p353) target = $region40
        $region39: #{tpu_custom_call.1} parent=11 // pred_region
          _
        $region40: #{tpu_custom_call.1} parent=11 // pred_fallthru
          _
        // Predicated region
        $region41: #{tpu_custom_call.1} parent=11 // pred_check
          %p356 = pneg %p230
        $region42: #{tpu_custom_call.1} parent=11 // pred_check_branch
          %358 = sbr.rel (%p356) target = $region44
        $region43: #{tpu_custom_call.1} parent=11 // pred_region
          _
        $region44: #{tpu_custom_call.1} parent=11 // pred_fallthru
          _
        // Predicated region
        $region45: #{tpu_custom_call.1} parent=11 // pred_check
          %p359 = pneg %p251
        $region46: #{tpu_custom_call.1} parent=11 // pred_check_branch
          %361 = sbr.rel (%p359) target = $region48
        $region47: #{tpu_custom_call.1} parent=11 // pred_region
          _
        $region48: #{tpu_custom_call.1} parent=11 // pred_fallthru
          _
        // Predicated region
        $region49: #{tpu_custom_call.1} parent=11 // pred_check
          %p362 = pneg %p272
        $region50: #{tpu_custom_call.1} parent=11 // pred_check_branch
          %364 = sbr.rel (%p362) target = $region52
        $region51: #{tpu_custom_call.1} parent=11 // pred_region
          _
        $region52: #{tpu_custom_call.1} parent=11 // pred_fallthru
          _
      $region12: #{tpu_custom_call.1} parent=5 // pred_fallthru
        _
      %p365 = scmp.lt.s32.totalorder %s22, 4
      // Predicated region
      $region53: #{tpu_custom_call.1} parent=5 // pred_check
        %p366 = pneg %p365
      $region54: #{tpu_custom_call.1} parent=5 // pred_check_branch
        %368 = sbr.rel (%p366) target = $region56
      $region55: #{tpu_custom_call.1} parent=5 // pred_region
        // Predicated region
        $region57: #{tpu_custom_call.1} parent=55 // pred_check
          %p369 = pneg %p56
        $region58: #{tpu_custom_call.1} parent=55 // pred_check_branch
          %371 = sbr.rel (%p369) target = $region60
        $region59: #{tpu_custom_call.1} parent=55 // pred_region
          %p372 = scmp.lt.s32.totalorder %s29, 1
          %s373 = scalar_select %p372, %s29, 1
          %p374 = scmp.lt.s32.totalorder %s30, 1
          %s375 = scalar_select %p374, %s30, 1
          %s376 = smul.addr %s373, 2
          %s377 = sadd.s32 %s375, %s376
          %s378 = smul.addr %s377, 8
          %s379 = scalar_lea.vmem %s0, %s378
        $region60: #{tpu_custom_call.1} parent=55 // pred_fallthru
          _
      $region56: #{tpu_custom_call.1} parent=5 // pred_fallthru
        _
      %p380 = scmp.le.s32.totalorder 1, %s22
      %p381 = scmp.lt.s32.totalorder %s22, 5
      %p382 = pnand %p380, %p381
      %p383 = pneg %p382
      // Predicated region
      $region61: #{tpu_custom_call.1} parent=5 // pred_check
        _
      $region62: #{tpu_custom_call.1} parent=5 // pred_check_branch
        %385 = sbr.rel (%p382) target = $region64
      $region63: #{tpu_custom_call.1} parent=5 // pred_region
        %s386 = ssub.s32 %s22, 1
        // Predicated region
        $region65: #{tpu_custom_call.1} parent=63 // pred_check
          %p387 = pneg %p104
        $region66: #{tpu_custom_call.1} parent=63 // pred_check_branch
          %389 = sbr.rel (%p387) target = $region68
        $region67: #{tpu_custom_call.1} parent=63 // pred_region
          %390 = dma.done [#allocation5], 512
        $region68: #{tpu_custom_call.1} parent=63 // pred_fallthru
          _
        // Predicated region
        $region69: #{tpu_custom_call.1} parent=63 // pred_check
          %p391 = pneg %p125
        $region70: #{tpu_custom_call.1} parent=63 // pred_check_branch
          %393 = sbr.rel (%p391) target = $region72
        $region71: #{tpu_custom_call.1} parent=63 // pred_region
          %394 = dma.done [#allocation8], 512
        $region72: #{tpu_custom_call.1} parent=63 // pred_fallthru
          _
        %p395 = scmp.lt.s32.totalorder %s31, 1
        %s396 = scalar_select %p395, %s31, 1
        %p397 = scmp.lt.s32.totalorder %s32, 1
        %s398 = scalar_select %p397, %s32, 1
        %s399 = smul.addr %s396, 2
        %s400 = sadd.s32 %s398, %s399
        %s401 = smul.addr %s400, 8
        %s402 = scalar_lea.vmem %s0, %s401
        %p403 = pneg %p62
        %p404 = pneg %p59
        %p405 = pneg %p83
        %p406 = pneg %p80
        %p407 = pneg %p104
        %p408 = pneg %p101
        %p409 = pneg %p125
        %p410 = pneg %p122
        %p411 = pneg %p146
        %p412 = pneg %p143
        %p413 = pneg %p167
        %p414 = pneg %p164
        %p415 = pneg %p188
        %p416 = pneg %p185
        %p417 = pneg %p209
        %p418 = pneg %p206
        %p419 = pneg %p230
        %p420 = pneg %p227
        %p421 = pneg %p251
        %p422 = pneg %p248
        %p423 = pneg %p272
        %p424 = pneg %p269
        %p425 = pneg %p300
        %p426 = pneg %p297
        %s427 = sand.u32 %s287, 1
        %s428 = scalar_lea.sflag [#allocation6], %s427
        %s429 = sand.u32 %s287, 1
        %s430 = smul.addr %s429, 8
        %s431 = scalar_lea.vmem [#allocation9], %s430
        %p432 = scmp.lt.s32.totalorder %s31, 1
        %s433 = scalar_select %p432, %s31, 1
        %p434 = scmp.lt.s32.totalorder %s32, 1
        %s435 = scalar_select %p434, %s32, 1
        %s436 = smul.addr %s433, 2
        %s437 = sadd.s32 %s435, %s436
        %s438 = smul.addr %s437, 8
        %s439 = scalar_lea.vmem %s0, %s438
        %p441 = scmp.eq.s32.totalorder %s32, 0
        // Predicated region
        $region73: #{tpu_custom_call.1} parent=63 // pred_check
          %p442 = pneg %p441
        $region74: #{tpu_custom_call.1} parent=63 // pred_check_branch
          %444 = sbr.rel (%p442) target = $region76
        $region75: #{tpu_custom_call.1} parent=63 // pred_region
          %vm445 = vcmask 523264
          %446 = vst.msk [vmem:[#allocation2] sm:$0xff] %vm445, 0.0
          %447 = vst.msk [vmem:[#allocation2 + $0x8] sm:$0xff] %vm445, 0.0
          %vm448 = vcmask 785408
          %449 = vst.msk [vmem:[#allocation3] sm:$0xff] %vm448, 0.0
          %vm450 = vcmask 780288
          %451 = vst.msk [vmem:[#allocation3 + $0x8] sm:$0x7] %vm450, 0.0
        $region76: #{tpu_custom_call.1} parent=63 // pred_fallthru
          _
        %v452 = vld [vmem:[%s439] sm:$0xff]
        %v453 = vmul.f32 %v452, %v452
        %vm454 = vcmask 261120
        %v455 = vsel %vm454, %v453, 0.0
        %456 = vadd.xlane.f32.xlu0 %v455
        %v457 = vpop.xlane.xlu0 %456
        %v458 = vrcp.pop 32.0
        %v459 = vmul.f32 %v457, %v458
        %v460 = vadd.f32 %v459, 1e-05
        %v461 = vrsqrt.pop %v460
        %v462 = vmul.f32 %v452, %v461
        %v463 = vld [vmem:[%s1] sm:$0x1]
        %v465 = vlaneseq
        %v466 = vshrl.u32 %v465, 7
        %v467 = vsub.s32 0, %v466
        %v468 = vrot.slane %v463, %v467
        %v470 = vmul.f32 %v462, %v468
        %v471 = vpack.c.bf16 %v470, %v470
        %v472 = vld [vmem:[#allocation4] sm:$0xff]
        %v473 = vld [vmem:[#allocation4 + $0x8] sm:$0xff]
        %v474 = vld [vmem:[#allocation4 + $0x10] sm:$0xff]
        %v475 = vld [vmem:[#allocation4 + $0x18] sm:$0xff]
        %v480 = vunpack.c.l.b16 %v472
        %v481 = vunpack.c.h.b16 %v472
        %v482 = vunpack.c.l.b16 %v473
        %v483 = vunpack.c.h.b16 %v473
        %v484 = vunpack.c.l.b16 %v474
        %v485 = vunpack.c.h.b16 %v474
        %v486 = vunpack.c.l.b16 %v475
        %v487 = vunpack.c.h.b16 %v475
        %v488 = vpack.c.b16 %v482, %v480
        %v489 = vpack.c.b16 %v483, %v481
        %v490 = vpack.c.b16 %v486, %v484
        %v491 = vpack.c.b16 %v487, %v485
        %v497 = vsel %vm454, %v471, 0
        %499 = vmatprep.subr.bf16.mxu0 %v489
        %500 = vmatpush1.bf16.msra.mxu0 %v488
        %501 = vmatprep.subr.bf16.mxu0 %v491
        %502 = vmatpush1.bf16.msra.mxu0 %v490
        %503 = vmatprep.subr.bf16.mxu0 0
        %504 = vmatpush1.bf16.msra.mxu0 0
        %505 = vmatprep.subr.bf16.mxu0 0
        %506 = vmatpush1.bf16.msra.mxu0 0
        %507 = vmatprep.subr.bf16.mxu0 0
        %508 = vmatpush1.bf16.msra.mxu0 0
        %509 = vmatprep.subr.bf16.mxu0 0
        %510 = vmatpush1.bf16.msra.mxu0 0
        %511 = vmatprep.subr.bf16.mxu0 0
        %512 = vmatpush1.bf16.msra.mxu0 0
        %513 = vmatprep.subr.bf16.mxu0 0
        %514 = vmatpush1.bf16.msra.mxu0 0
        %515 = vmatprep.subr.bf16.mxu0 0
        %516 = vmatpush1.bf16.msra.mxu0 0
        %517 = vmatprep.subr.bf16.mxu0 0
        %518 = vmatpush1.bf16.msra.mxu0 0
        %519 = vmatprep.subr.bf16.mxu0 0
        %520 = vmatpush1.bf16.msra.mxu0 0
        %521 = vmatprep.subr.bf16.mxu0 0
        %522 = vmatpush1.bf16.msra.mxu0 0
        %523 = vmatprep.subr.bf16.mxu0 0
        %524 = vmatpush1.bf16.msra.mxu0 0
        %525 = vmatprep.subr.bf16.mxu0 0
        %526 = vmatpush1.bf16.msra.mxu0 0
        %527 = vmatprep.subr.bf16.mxu0 0
        %528 = vmatpush1.bf16.msra.mxu0 0
        %529 = vmatprep.subr.bf16.mxu0 0
        %530 = vmatpush1.bf16.msra.mxu0 0
        %531 = vmatprep.mubr.bf16.mxu0 0
        %532 = vmatmul.mubr.bf16.gmra.mrb[0].mxu0 %v497
        %v533 = vpop.f32.mrb[0].mxu0
        %v534 = vadd.f32 0.0, %v533
        %v535 = vpop.f32.mrb[0].mxu0
        %v536 = vadd.f32 0.0, %v535
        %v537 = vpop.f32.mrb[0].mxu0
        %v538 = vpop.f32.mrb[0].mxu0
        %539 = vdwg.mxu0
        %v540 = vld [vmem:[#allocation7] sm:$0xff]
        %v541 = vld [vmem:[#allocation7 + $0x8] sm:$0xff]
        %v542 = vld [vmem:[#allocation7 + $0x10] sm:$0xff]
        %v543 = vld [vmem:[#allocation7 + $0x18] sm:$0xff]
        %546 = vrot.lane.b32.xlu0 %v534, 64
        %v547 = vpop.permute.xlu0 %546
        %548 = vrot.lane.b32.xlu0 %v536, 64
        %v549 = vpop.permute.xlu0 %548
        %vm550 = vcmask 523264
        %v551 = vsel %vm550, %v547, %v549
        %vm553 = vcmask 785408
        %554 = vst.msk [vmem:[#allocation3 + $0x3] sm:$0xff] %vm553, %v551
        %v555 = vld [vmem:[#allocation3] sm:$0xff]
        %v556 = vld [vmem:[#allocation3 + $0x8] sm:$0x7]
        %v557 = vld [vmem:[%s5] sm:$0x1]
        %v559 = vlaneseq
        %v560 = vshrl.u32 %v559, 7
        %v561 = vsub.s32 0, %v560
        %v562 = vrot.slane %v557, %v561
        %v564 = vadd.f32 %v562, 0.0
        %v565 = vld [vmem:[%s4] sm:$0x1]
        %v566 = vlaneseq
        %v567 = vshrl.u32 %v566, 7
        %v568 = vsub.s32 0, %v567
        %v569 = vrot.slane %v565, %v568
        %v570 = vmul.f32 %v555, %v569
        %v571 = vadd.f32 %v564, %v570
        %v572 = vld [vmem:[%s4 + $0x1] sm:$0x1]
        %v573 = vlaneseq
        %v574 = vshrl.u32 %v573, 7
        %v575 = vsub.s32 0, %v574
        %v576 = vrot.slane %v572, %v575
        %v577 = vmul.f32 %v555, %v576
        %v578 = vmul.f32 %v556, %v576
        %vm581 = vcmask 1046528
        %v582 = vrot.slane %v577, 1
        %v583 = vrot.slane %v578, 1
        %v584 = vsel %vm581, %v582, %v583
        %v586 = vadd.f32 %v571, %v584
        %v587 = vld [vmem:[%s4 + $0x2] sm:$0x1]
        %v588 = vlaneseq
        %v589 = vshrl.u32 %v588, 7
        %v590 = vsub.s32 0, %v589
        %v591 = vrot.slane %v587, %v590
        %v592 = vmul.f32 %v555, %v591
        %v593 = vmul.f32 %v556, %v591
        %vm596 = vcmask 1045504
        %v597 = vrot.slane %v592, 2
        %v598 = vrot.slane %v593, 2
        %v599 = vsel %vm596, %v597, %v598
        %v601 = vadd.f32 %v586, %v599
        %v602 = vld [vmem:[%s4 + $0x3] sm:$0x1]
        %v603 = vlaneseq
        %v604 = vshrl.u32 %v603, 7
        %v605 = vsub.s32 0, %v604
        %v606 = vrot.slane %v602, %v605
        %v607 = vmul.f32 %v555, %v606
        %v608 = vmul.f32 %v556, %v606
        %vm611 = vcmask 1044480
        %v612 = vrot.slane %v607, 3
        %v613 = vrot.slane %v608, 3
        %v614 = vsel %vm611, %v612, %v613
        %v616 = vadd.f32 %v601, %v614
        %vm617 = vcmask 780288
        %618 = vst.msk [vmem:[#allocation3] sm:$0x7] %vm617, %v556
        %v619 = vsub.f32 0.0, %v616
        %v620 = vmul.f32 %v619, 1.442695
        %v621 = vpow.pop %v620
        %v622 = vadd.f32 %v621, 1.0
        %v623 = vrcp.pop %v622
        %v624 = vmul.f32 1.0, %v623
        %v625 = vmul.f32 %v616, %v624
        %v626 = vld [vmem:[%s6] sm:$0x1]
        %v628 = vlaneseq
        %v629 = vshrl.u32 %v628, 7
        %v630 = vsub.s32 0, %v629
        %v631 = vrot.slane %v626, %v630
        %v634 = vsel %vm454, %v470, 0
        %636 = vmatprep.subr.mxu0 0.0
        %637 = vmatpush1.msra.mxu0 %v540
        %638 = vmatprep.subr.mxu0 0.0
        %639 = vmatpush1.msra.mxu0 %v541
        %640 = vmatprep.subr.mxu0 0.0
        %641 = vmatpush1.msra.mxu0 %v542
        %642 = vmatprep.subr.mxu0 0.0
        %643 = vmatpush1.msra.mxu0 %v543
        %644 = vmatprep.subr.mxu0 0.0
        %645 = vmatpush1.msra.mxu0 0.0
        %646 = vmatprep.subr.mxu0 0.0
        %647 = vmatpush1.msra.mxu0 0.0
        %648 = vmatprep.subr.mxu0 0.0
        %649 = vmatpush1.msra.mxu0 0.0
        %650 = vmatprep.subr.mxu0 0.0
        %651 = vmatpush1.msra.mxu0 0.0
        %652 = vmatprep.subr.mxu0 0.0
        %653 = vmatpush1.msra.mxu0 0.0
        %654 = vmatprep.subr.mxu0 0.0
        %655 = vmatpush1.msra.mxu0 0.0
        %656 = vmatprep.subr.mxu0 0.0
        %657 = vmatpush1.msra.mxu0 0.0
        %658 = vmatprep.subr.mxu0 0.0
        %659 = vmatpush1.msra.mxu0 0.0
        %660 = vmatprep.subr.mxu0 0.0
        %661 = vmatpush1.msra.mxu0 0.0
        %662 = vmatprep.subr.mxu0 0.0
        %663 = vmatpush1.msra.mxu0 0.0
        %664 = vmatprep.subr.mxu0 0.0
        %665 = vmatpush1.msra.mxu0 0.0
        %666 = vmatprep.subr.mxu0 0.0
        %667 = vmatpush1.msra.mxu0 0.0
        %668 = vmatprep.subr.mxu0 0.0
        %669 = vmatpush1.msra.mxu0 0.0
        %670 = vmatprep.subr.mxu0 0.0
        %671 = vmatpush1.msra.mxu0 0.0
        %672 = vmatprep.subr.mxu0 0.0
        %673 = vmatpush1.msra.mxu0 0.0
        %674 = vmatprep.subr.mxu0 0.0
        %675 = vmatpush1.msra.mxu0 0.0
        %676 = vmatprep.subr.mxu0 0.0
        %677 = vmatpush1.msra.mxu0 0.0
        %678 = vmatprep.subr.mxu0 0.0
        %679 = vmatpush1.msra.mxu0 0.0
        %680 = vmatprep.subr.mxu0 0.0
        %681 = vmatpush1.msra.mxu0 0.0
        %682 = vmatprep.subr.mxu0 0.0
        %683 = vmatpush1.msra.mxu0 0.0
        %684 = vmatprep.subr.mxu0 0.0
        %685 = vmatpush1.msra.mxu0 0.0
        %686 = vmatprep.subr.mxu0 0.0
        %687 = vmatpush1.msra.mxu0 0.0
        %688 = vmatprep.subr.mxu0 0.0
        %689 = vmatpush1.msra.mxu0 0.0
        %690 = vmatprep.subr.mxu0 0.0
        %691 = vmatpush1.msra.mxu0 0.0
        %692 = vmatprep.subr.mxu0 0.0
        %693 = vmatpush1.msra.mxu0 0.0
        %694 = vmatprep.subr.mxu0 0.0
        %695 = vmatpush1.msra.mxu0 0.0
        %696 = vmatprep.subr.mxu0 0.0
        %697 = vmatpush1.msra.mxu0 0.0
        %698 = vmatprep.subr.mxu0 0.0
        %699 = vmatpush1.msra.mxu0 0.0
        %700 = vmatprep.mubr.f32.mxu0 0.0
        %701 = vmatmul.mubr.f32.gmra.mrb[0].mxu0 %v634
        %v702 = vpop.f32.mrb[0].mxu0
        %v703 = vadd.f32 %v631, %v702
        %v704 = vpop.f32.mrb[0].mxu0
        %705 = vdwg.mxu0
        %vm706 = vcmp.gt.f32.partialorder %v703, 20.0
        %v707 = vmin.f32 %v703, 20.0
        %v708 = vmul.f32 %v707, 1.442695
        %v709 = vpow.pop %v708
        %v710 = vadd.f32 %v709, 1.0
        %v711 = vlog2.pop %v710
        %v712 = vmul.f32 %v711, 0.6931472
        %v713 = vmul.f32 -0.5, %v709
        %v714 = vadd.f32 %v713, 1.0
        %v715 = vmul.f32 %v714, %v709
        %v716 = vand.u32 2147483647, %v709
        %vm717 = vcmp.lt.f32.partialorder %v716, 0.0004427343
        %v718 = vsel %vm717, %v715, %v712
        %v719 = vsel %vm706, %v703, %v718
        %v720 = vmax.f32 %v719, 0.0
        %v721 = vmin.f32 %v720, 100.0
        %v722 = vld [vmem:[%s7] sm:$0x1]
        %v724 = vlaneseq
        %v725 = vshrl.u32 %v724, 7
        %v726 = vsub.s32 0, %v725
        %v727 = vrot.slane %v722, %v726
        %v729 = vmul.f32 %v721, %v727
        %v730 = vmul.f32 %v625, %v721
        %v731 = vlaneseq
        %v732 = vshrl.u32 %v731, 7
        %v733 = vlaneseq
        %v734 = vand.u32 %v733, 127
        %vm735 = vcmp.ge.s32.totalorder %v732, %v734
        %v736 = vsel %vm735, 1, 0
        %v737 = vcvt.s32.f32 %v736
        %vm738 = vcmask 64512
        %v740 = vsel %vm738, %v737, 0
        %742 = vmatprep.subr.mxu0 0.0
        %743 = vmatpush1.msra.mxu0 %v729
        %744 = vmatprep.subr.mxu0 0.0
        %745 = vmatpush1.msra.mxu0 0.0
        %746 = vmatprep.subr.mxu0 0.0
        %747 = vmatpush1.msra.mxu0 0.0
        %748 = vmatprep.subr.mxu0 0.0
        %749 = vmatpush1.msra.mxu0 0.0
        %750 = vmatprep.subr.mxu0 0.0
        %751 = vmatpush1.msra.mxu0 0.0
        %752 = vmatprep.subr.mxu0 0.0
        %753 = vmatpush1.msra.mxu0 0.0
        %754 = vmatprep.subr.mxu0 0.0
        %755 = vmatpush1.msra.mxu0 0.0
        %756 = vmatprep.subr.mxu0 0.0
        %757 = vmatpush1.msra.mxu0 0.0
        %758 = vmatprep.subr.mxu0 0.0
        %759 = vmatpush1.msra.mxu0 0.0
        %760 = vmatprep.subr.mxu0 0.0
        %761 = vmatpush1.msra.mxu0 0.0
        %762 = vmatprep.subr.mxu0 0.0
        %763 = vmatpush1.msra.mxu0 0.0
        %764 = vmatprep.subr.mxu0 0.0
        %765 = vmatpush1.msra.mxu0 0.0
        %766 = vmatprep.subr.mxu0 0.0
        %767 = vmatpush1.msra.mxu0 0.0
        %768 = vmatprep.subr.mxu0 0.0
        %769 = vmatpush1.msra.mxu0 0.0
        %770 = vmatprep.subr.mxu0 0.0
        %771 = vmatpush1.msra.mxu0 0.0
        %772 = vmatprep.subr.mxu0 0.0
        %773 = vmatpush1.msra.mxu0 0.0
        %774 = vmatprep.subr.mxu0 0.0
        %775 = vmatpush1.msra.mxu0 0.0
        %776 = vmatprep.subr.mxu0 0.0
        %777 = vmatpush1.msra.mxu0 0.0
        %778 = vmatprep.subr.mxu0 0.0
        %779 = vmatpush1.msra.mxu0 0.0
        %780 = vmatprep.subr.mxu0 0.0
        %781 = vmatpush1.msra.mxu0 0.0
        %782 = vmatprep.subr.mxu0 0.0
        %783 = vmatpush1.msra.mxu0 0.0
        %784 = vmatprep.subr.mxu0 0.0
        %785 = vmatpush1.msra.mxu0 0.0
        %786 = vmatprep.subr.mxu0 0.0
        %787 = vmatpush1.msra.mxu0 0.0
        %788 = vmatprep.subr.mxu0 0.0
        %789 = vmatpush1.msra.mxu0 0.0
        %790 = vmatprep.subr.mxu0 0.0
        %791 = vmatpush1.msra.mxu0 0.0
        %792 = vmatprep.subr.mxu0 0.0
        %793 = vmatpush1.msra.mxu0 0.0
        %794 = vmatprep.subr.mxu0 0.0
        %795 = vmatpush1.msra.mxu0 0.0
        %796 = vmatprep.subr.mxu0 0.0
        %797 = vmatpush1.msra.mxu0 0.0
        %798 = vmatprep.subr.mxu0 0.0
        %799 = vmatpush1.msra.mxu0 0.0
        %800 = vmatprep.subr.mxu0 0.0
        %801 = vmatpush1.msra.mxu0 0.0
        %802 = vmatprep.subr.mxu0 0.0
        %803 = vmatpush1.msra.mxu0 0.0
        %804 = vmatprep.subr.mxu0 0.0
        %805 = vmatpush1.msra.mxu0 0.0
        %806 = vmatprep.mubr.f32.mxu0 0.0
        %807 = vmatmul.mubr.f32.gmra.mrb[0].mxu0 %v740
        %v808 = vpop.f32.mrb[0].mxu0
        %v809 = vadd.f32 0.0, %v808
        %v810 = vpop.f32.mrb[0].mxu0
        %811 = vdwg.mxu0
        %v812 = vmul.f32 %v809, 1.442695
        %v813 = vpow.pop %v812
        %v814 = vlaneseq
        %v815 = vshrl.u32 %v814, 7
        %v816 = vsub.s32 7, %v815
        %v817 = vrot.slane %v809, %v816
        %v818 = vsub.f32 %v817, %v809
        %v819 = vmul.f32 %v818, 1.442695
        %v820 = vpow.pop %v819
        %v821 = vmul.f32 %v730, %v820
        %v822 = vpack.c.bf16 %v625, %v625
        %v823 = vld [vmem:[#allocation2] sm:$0xff]
        %v824 = vld [vmem:[#allocation2 + $0x8] sm:$0xff]
        %v825 = vpack.c.bf16 %v824, %v823
        %827 = vrot.lane.b32.xlu0 %v822, 48
        %v828 = vpop.permute.xlu0 %827
        %vm829 = vcmask 130048
        %v831 = vsel %vm829, %v828, 0
        %833 = vmatprep.subr.bf16.mxu0 0
        %834 = vmatpush1.bf16.msra.mxu0 %v825
        %835 = vmatprep.subr.bf16.mxu0 0
        %836 = vmatpush1.bf16.msra.mxu0 0
        %837 = vmatprep.subr.bf16.mxu0 0
        %838 = vmatpush1.bf16.msra.mxu0 0
        %839 = vmatprep.subr.bf16.mxu0 0
        %840 = vmatpush1.bf16.msra.mxu0 0
        %841 = vmatprep.subr.bf16.mxu0 0
        %842 = vmatpush1.bf16.msra.mxu0 0
        %843 = vmatprep.subr.bf16.mxu0 0
        %844 = vmatpush1.bf16.msra.mxu0 0
        %845 = vmatprep.subr.bf16.mxu0 0
        %846 = vmatpush1.bf16.msra.mxu0 0
        %847 = vmatprep.subr.bf16.mxu0 0
        %848 = vmatpush1.bf16.msra.mxu0 0
        %849 = vmatprep.subr.bf16.mxu0 0
        %850 = vmatpush1.bf16.msra.mxu0 0
        %851 = vmatprep.subr.bf16.mxu0 0
        %852 = vmatpush1.bf16.msra.mxu0 0
        %853 = vmatprep.subr.bf16.mxu0 0
        %854 = vmatpush1.bf16.msra.mxu0 0
        %855 = vmatprep.subr.bf16.mxu0 0
        %856 = vmatpush1.bf16.msra.mxu0 0
        %857 = vmatprep.subr.bf16.mxu0 0
        %858 = vmatpush1.bf16.msra.mxu0 0
        %859 = vmatprep.subr.bf16.mxu0 0
        %860 = vmatpush1.bf16.msra.mxu0 0
        %861 = vmatprep.subr.bf16.mxu0 0
        %862 = vmatpush1.bf16.msra.mxu0 0
        %863 = vmatprep.subr.bf16.mxu0 0
        %864 = vmatpush1.bf16.msra.mxu0 0
        %865 = vmatprep.mubr.bf16.mxu0 0
        %866 = vmatmul.mubr.bf16.gmra.mrb[0].mxu0 %v831
        %v867 = vpop.f32.mrb[0].mxu0
        %v868 = vadd.f32 0.0, %v867
        %v869 = vpop.f32.mrb[0].mxu0
        %v870 = vpop.f32.mrb[0].mxu0
        %v871 = vpop.f32.mrb[0].mxu0
        %872 = vdwg.mxu0
        %v873 = vmul.f32 %v813, %v868
        %874 = vrot.lane.b32.xlu0 %v822, 64
        %v875 = vpop.permute.xlu0 %874
        %v877 = vsel %vm829, %v875, 0
        %879 = vmatprep.subr.bf16.mxu0 0
        %880 = vmatpush1.bf16.xpose.msra.mxu0 %v877
        %881 = vmatprep.subr.bf16.mxu0 0
        %882 = vmatpush1.bf16.xpose.msra.mxu0 0
        %883 = vmatprep.subr.bf16.mxu0 0
        %884 = vmatpush1.bf16.xpose.msra.mxu0 0
        %885 = vmatprep.subr.bf16.mxu0 0
        %886 = vmatpush1.bf16.xpose.msra.mxu0 0
        %887 = vmatprep.subr.bf16.mxu0 0
        %888 = vmatpush1.bf16.xpose.msra.mxu0 0
        %889 = vmatprep.subr.bf16.mxu0 0
        %890 = vmatpush1.bf16.xpose.msra.mxu0 0
        %891 = vmatprep.subr.bf16.mxu0 0
        %892 = vmatpush1.bf16.xpose.msra.mxu0 0
        %893 = vmatprep.subr.bf16.mxu0 0
        %894 = vmatpush1.bf16.xpose.msra.mxu0 0
        %895 = vmatprep.subr.bf16.mxu0 0
        %896 = vmatpush1.bf16.xpose.msra.mxu0 0
        %897 = vmatprep.subr.bf16.mxu0 0
        %898 = vmatpush1.bf16.xpose.msra.mxu0 0
        %899 = vmatprep.subr.bf16.mxu0 0
        %900 = vmatpush1.bf16.xpose.msra.mxu0 0
        %901 = vmatprep.subr.bf16.mxu0 0
        %902 = vmatpush1.bf16.xpose.msra.mxu0 0
        %903 = vmatprep.subr.bf16.mxu0 0
        %904 = vmatpush1.bf16.xpose.msra.mxu0 0
        %905 = vmatprep.subr.bf16.mxu0 0
        %906 = vmatpush1.bf16.xpose.msra.mxu0 0
        %907 = vmatprep.subr.bf16.mxu0 0
        %908 = vmatpush1.bf16.xpose.msra.mxu0 0
        %909 = vmatprep.subr.bf16.mxu0 0
        %910 = vmatpush1.bf16.xpose.msra.mxu0 0
        %911 = vmatprep.mubr.bf16.mxu0 0
        %912 = vmatmul.mubr.bf16.gmra.mrb[0].mxu0 %v831
        %v913 = vpop.f32.mrb[0].mxu0
        %v914 = vadd.f32 0.0, %v913
        %v915 = vpop.f32.mrb[0].mxu0
        %v916 = vpop.f32.mrb[0].mxu0
        %v917 = vpop.f32.mrb[0].mxu0
        %918 = vdwg.mxu0
        %920 = vset.pattern.permute.xlu0 0
        %921 = vperm.xlu0 %920, %v809
        %v922 = vpop.permute.xlu0 %921
        %v924 = vlaneseq
        %v925 = vshrl.u32 %v924, 7
        %v926 = vsub.s32 %v734, %v925
        %v927 = vrot.slane %v922, %v926
        %vm928 = vcmask 1042434
        %v929 = vsel %vm928, %v927, %v927
        %vm930 = vcmask 1043459
        %v931 = vsel %vm930, %v927, %v929
        %vm932 = vcmask 1044484
        %v933 = vsel %vm932, %v927, %v931
        %vm934 = vcmask 1045509
        %v935 = vsel %vm934, %v927, %v933
        %vm936 = vcmask 1046534
        %v937 = vsel %vm936, %v927, %v935
        %vm938 = vcmask 1047559
        %v939 = vsel %vm938, %v927, %v937
        %v941 = vsub.f32 %v922, %v939
        %v942 = vmin.f32 %v941, 0.0
        %v943 = vmul.f32 %v942, 1.442695
        %v944 = vpow.pop %v943
        %v945 = vsel %vm735, %v944, 0.0
        %vm946 = vcmp.ge.s32.totalorder %v734, 0
        %vm947 = vcmp.lt.s32.totalorder %v734, 16
        %vm948 = vmand %vm946, %vm947
        %v949 = vsel %vm948, 1, 0
        %v950 = vcvt.s32.f32 %v949
        %v951 = vmul.f32 %v730, %v950
        %v952 = vmul.f32 %v914, %v945
        %v953 = vpack.c.bf16 %v952, %v952
        %v954 = vpack.c.bf16 %v951, %v951
        %v956 = vsel %vm738, %v953, 0
        %vm958 = vcmask 1043456
        %v960 = vsel %vm958, %v954, 0
        %962 = vmatprep.subr.bf16.mxu0 0
        %963 = vmatpush1.bf16.msra.mxu0 %v960
        %964 = vmatprep.subr.bf16.mxu0 0
        %965 = vmatpush1.bf16.msra.mxu0 0
        %966 = vmatprep.subr.bf16.mxu0 0
        %967 = vmatpush1.bf16.msra.mxu0 0
        %968 = vmatprep.subr.bf16.mxu0 0
        %969 = vmatpush1.bf16.msra.mxu0 0
        %970 = vmatprep.subr.bf16.mxu0 0
        %971 = vmatpush1.bf16.msra.mxu0 0
        %972 = vmatprep.subr.bf16.mxu0 0
        %973 = vmatpush1.bf16.msra.mxu0 0
        %974 = vmatprep.subr.bf16.mxu0 0
        %975 = vmatpush1.bf16.msra.mxu0 0
        %976 = vmatprep.subr.bf16.mxu0 0
        %977 = vmatpush1.bf16.msra.mxu0 0
        %978 = vmatprep.subr.bf16.mxu0 0
        %979 = vmatpush1.bf16.msra.mxu0 0
        %980 = vmatprep.subr.bf16.mxu0 0
        %981 = vmatpush1.bf16.msra.mxu0 0
        %982 = vmatprep.subr.bf16.mxu0 0
        %983 = vmatpush1.bf16.msra.mxu0 0
        %984 = vmatprep.subr.bf16.mxu0 0
        %985 = vmatpush1.bf16.msra.mxu0 0
        %986 = vmatprep.subr.bf16.mxu0 0
        %987 = vmatpush1.bf16.msra.mxu0 0
        %988 = vmatprep.subr.bf16.mxu0 0
        %989 = vmatpush1.bf16.msra.mxu0 0
        %990 = vmatprep.subr.bf16.mxu0 0
        %991 = vmatpush1.bf16.msra.mxu0 0
        %992 = vmatprep.subr.bf16.mxu0 0
        %993 = vmatpush1.bf16.msra.mxu0 0
        %994 = vmatprep.mubr.bf16.mxu0 0
        %995 = vmatmul.mubr.bf16.gmra.mrb[0].mxu0 %v956
        %v996 = vpop.f32.mrb[0].mxu0
        %v997 = vadd.f32 0.0, %v996
        %v998 = vpop.f32.mrb[0].mxu0
        %v999 = vpop.f32.mrb[0].mxu0
        %v1000 = vpop.f32.mrb[0].mxu0
        %1001 = vdwg.mxu0
        %v1002 = vadd.f32 %v873, %v997
        %1003 = vset.pattern.permute.xlu0 16
        %1004 = vperm.xlu0 %1003, %v809
        %v1005 = vpop.permute.xlu0 %1004
        %v1007 = vlaneseq
        %v1008 = vshrl.u32 %v1007, 7
        %v1009 = vsub.s32 %v734, %v1008
        %v1010 = vrot.slane %v1005, %v1009
        %v1011 = vsel %vm928, %v1010, %v1010
        %v1012 = vsel %vm930, %v1010, %v1011
        %v1013 = vsel %vm932, %v1010, %v1012
        %v1014 = vsel %vm934, %v1010, %v1013
        %v1015 = vsel %vm936, %v1010, %v1014
        %v1016 = vsel %vm938, %v1010, %v1015
        %v1018 = vsub.f32 %v1005, %v1016
        %v1019 = vmin.f32 %v1018, 0.0
        %v1020 = vmul.f32 %v1019, 1.442695
        %v1021 = vpow.pop %v1020
        %v1022 = vsel %vm735, %v1021, 0.0
        %vm1023 = vcmp.ge.s32.totalorder %v734, 16
        %vm1024 = vcmp.lt.s32.totalorder %v734, 32
        %vm1025 = vmand %vm1023, %vm1024
        %v1026 = vsel %vm1025, 1, 0
        %v1027 = vcvt.s32.f32 %v1026
        %v1028 = vmul.f32 %v730, %v1027
        %v1029 = vmul.f32 %v914, %v1022
        %v1030 = vpack.c.bf16 %v1029, %v1029
        %v1031 = vpack.c.bf16 %v1028, %v1028
        %v1033 = vsel %vm738, %v1030, 0
        %v1036 = vsel %vm958, %v1031, 0
        %1038 = vmatprep.subr.bf16.mxu0 0
        %1039 = vmatpush1.bf16.msra.mxu0 %v1036
        %1040 = vmatprep.subr.bf16.mxu0 0
        %1041 = vmatpush1.bf16.msra.mxu0 0
        %1042 = vmatprep.subr.bf16.mxu0 0
        %1043 = vmatpush1.bf16.msra.mxu0 0
        %1044 = vmatprep.subr.bf16.mxu0 0
        %1045 = vmatpush1.bf16.msra.mxu0 0
        %1046 = vmatprep.subr.bf16.mxu0 0
        %1047 = vmatpush1.bf16.msra.mxu0 0
        %1048 = vmatprep.subr.bf16.mxu0 0
        %1049 = vmatpush1.bf16.msra.mxu0 0
        %1050 = vmatprep.subr.bf16.mxu0 0
        %1051 = vmatpush1.bf16.msra.mxu0 0
        %1052 = vmatprep.subr.bf16.mxu0 0
        %1053 = vmatpush1.bf16.msra.mxu0 0
        %1054 = vmatprep.subr.bf16.mxu0 0
        %1055 = vmatpush1.bf16.msra.mxu0 0
        %1056 = vmatprep.subr.bf16.mxu0 0
        %1057 = vmatpush1.bf16.msra.mxu0 0
        %1058 = vmatprep.subr.bf16.mxu0 0
        %1059 = vmatpush1.bf16.msra.mxu0 0
        %1060 = vmatprep.subr.bf16.mxu0 0
        %1061 = vmatpush1.bf16.msra.mxu0 0
        %1062 = vmatprep.subr.bf16.mxu0 0
        %1063 = vmatpush1.bf16.msra.mxu0 0
        %1064 = vmatprep.subr.bf16.mxu0 0
        %1065 = vmatpush1.bf16.msra.mxu0 0
        %1066 = vmatprep.subr.bf16.mxu0 0
        %1067 = vmatpush1.bf16.msra.mxu0 0
        %1068 = vmatprep.subr.bf16.mxu0 0
        %1069 = vmatpush1.bf16.msra.mxu0 0
        %1070 = vmatprep.mubr.bf16.mxu0 0
        %1071 = vmatmul.mubr.bf16.gmra.mrb[0].mxu0 %v1033
        %v1072 = vpop.f32.mrb[0].mxu0
        %v1073 = vadd.f32 0.0, %v1072
        %v1074 = vpop.f32.mrb[0].mxu0
        %v1075 = vpop.f32.mrb[0].mxu0
        %v1076 = vpop.f32.mrb[0].mxu0
        %1077 = vdwg.mxu0
        %v1078 = vadd.f32 %v1002, %v1073
        %1079 = vset.pattern.permute.xlu0 32
        %1080 = vperm.xlu0 %1079, %v809
        %v1081 = vpop.permute.xlu0 %1080
        %v1083 = vlaneseq
        %v1084 = vshrl.u32 %v1083, 7
        %v1085 = vsub.s32 %v734, %v1084
        %v1086 = vrot.slane %v1081, %v1085
        %v1087 = vsel %vm928, %v1086, %v1086
        %v1088 = vsel %vm930, %v1086, %v1087
        %v1089 = vsel %vm932, %v1086, %v1088
        %v1090 = vsel %vm934, %v1086, %v1089
        %v1091 = vsel %vm936, %v1086, %v1090
        %v1092 = vsel %vm938, %v1086, %v1091
        %v1094 = vsub.f32 %v1081, %v1092
        %v1095 = vmin.f32 %v1094, 0.0
        %v1096 = vmul.f32 %v1095, 1.442695
        %v1097 = vpow.pop %v1096
        %v1098 = vsel %vm735, %v1097, 0.0
        %vm1099 = vcmp.ge.s32.totalorder %v734, 32
        %vm1100 = vcmp.lt.s32.totalorder %v734, 48
        %vm1101 = vmand %vm1099, %vm1100
        %v1102 = vsel %vm1101, 1, 0
        %v1103 = vcvt.s32.f32 %v1102
        %v1104 = vmul.f32 %v730, %v1103
        %v1105 = vmul.f32 %v914, %v1098
        %v1106 = vpack.c.bf16 %v1105, %v1105
        %v1107 = vpack.c.bf16 %v1104, %v1104
        %v1109 = vsel %vm738, %v1106, 0
        %v1112 = vsel %vm958, %v1107, 0
        %1114 = vmatprep.subr.bf16.mxu0 0
        %1115 = vmatpush1.bf16.msra.mxu0 %v1112
        %1116 = vmatprep.subr.bf16.mxu0 0
        %1117 = vmatpush1.bf16.msra.mxu0 0
        %1118 = vmatprep.subr.bf16.mxu0 0
        %1119 = vmatpush1.bf16.msra.mxu0 0
        %1120 = vmatprep.subr.bf16.mxu0 0
        %1121 = vmatpush1.bf16.msra.mxu0 0
        %1122 = vmatprep.subr.bf16.mxu0 0
        %1123 = vmatpush1.bf16.msra.mxu0 0
        %1124 = vmatprep.subr.bf16.mxu0 0
        %1125 = vmatpush1.bf16.msra.mxu0 0
        %1126 = vmatprep.subr.bf16.mxu0 0
        %1127 = vmatpush1.bf16.msra.mxu0 0
        %1128 = vmatprep.subr.bf16.mxu0 0
        %1129 = vmatpush1.bf16.msra.mxu0 0
        %1130 = vmatprep.subr.bf16.mxu0 0
        %1131 = vmatpush1.bf16.msra.mxu0 0
        %1132 = vmatprep.subr.bf16.mxu0 0
        %1133 = vmatpush1.bf16.msra.mxu0 0
        %1134 = vmatprep.subr.bf16.mxu0 0
        %1135 = vmatpush1.bf16.msra.mxu0 0
        %1136 = vmatprep.subr.bf16.mxu0 0
        %1137 = vmatpush1.bf16.msra.mxu0 0
        %1138 = vmatprep.subr.bf16.mxu0 0
        %1139 = vmatpush1.bf16.msra.mxu0 0
        %1140 = vmatprep.subr.bf16.mxu0 0
        %1141 = vmatpush1.bf16.msra.mxu0 0
        %1142 = vmatprep.subr.bf16.mxu0 0
        %1143 = vmatpush1.bf16.msra.mxu0 0
        %1144 = vmatprep.subr.bf16.mxu0 0
        %1145 = vmatpush1.bf16.msra.mxu0 0
        %1146 = vmatprep.mubr.bf16.mxu0 0
        %1147 = vmatmul.mubr.bf16.gmra.mrb[0].mxu0 %v1109
        %v1148 = vpop.f32.mrb[0].mxu0
        %v1149 = vadd.f32 0.0, %v1148
        %v1150 = vpop.f32.mrb[0].mxu0
        %v1151 = vpop.f32.mrb[0].mxu0
        %v1152 = vpop.f32.mrb[0].mxu0
        %1153 = vdwg.mxu0
        %v1154 = vadd.f32 %v1078, %v1149
        %1155 = vset.pattern.permute.xlu0 48
        %1156 = vperm.xlu0 %1155, %v809
        %v1157 = vpop.permute.xlu0 %1156
        %v1159 = vlaneseq
        %v1160 = vshrl.u32 %v1159, 7
        %v1161 = vsub.s32 %v734, %v1160
        %v1162 = vrot.slane %v1157, %v1161
        %v1163 = vsel %vm928, %v1162, %v1162
        %v1164 = vsel %vm930, %v1162, %v1163
        %v1165 = vsel %vm932, %v1162, %v1164
        %v1166 = vsel %vm934, %v1162, %v1165
        %v1167 = vsel %vm936, %v1162, %v1166
        %v1168 = vsel %vm938, %v1162, %v1167
        %v1170 = vsub.f32 %v1157, %v1168
        %v1171 = vmin.f32 %v1170, 0.0
        %v1172 = vmul.f32 %v1171, 1.442695
        %v1173 = vpow.pop %v1172
        %v1174 = vsel %vm735, %v1173, 0.0
        %vm1175 = vcmp.ge.s32.totalorder %v734, 48
        %vm1176 = vcmp.lt.s32.totalorder %v734, 64
        %vm1177 = vmand %vm1175, %vm1176
        %v1178 = vsel %vm1177, 1, 0
        %v1179 = vcvt.s32.f32 %v1178
        %v1180 = vmul.f32 %v730, %v1179
        %v1181 = vmul.f32 %v914, %v1174
        %v1182 = vpack.c.bf16 %v1181, %v1181
        %v1183 = vpack.c.bf16 %v1180, %v1180
        %v1185 = vsel %vm738, %v1182, 0
        %v1188 = vsel %vm958, %v1183, 0
        %1190 = vmatprep.subr.bf16.mxu0 0
        %1191 = vmatpush1.bf16.msra.mxu0 %v1188
        %1192 = vmatprep.subr.bf16.mxu0 0
        %1193 = vmatpush1.bf16.msra.mxu0 0
        %1194 = vmatprep.subr.bf16.mxu0 0
        %1195 = vmatpush1.bf16.msra.mxu0 0
        %1196 = vmatprep.subr.bf16.mxu0 0
        %1197 = vmatpush1.bf16.msra.mxu0 0
        %1198 = vmatprep.subr.bf16.mxu0 0
        %1199 = vmatpush1.bf16.msra.mxu0 0
        %1200 = vmatprep.subr.bf16.mxu0 0
        %1201 = vmatpush1.bf16.msra.mxu0 0
        %1202 = vmatprep.subr.bf16.mxu0 0
        %1203 = vmatpush1.bf16.msra.mxu0 0
        %1204 = vmatprep.subr.bf16.mxu0 0
        %1205 = vmatpush1.bf16.msra.mxu0 0
        %1206 = vmatprep.subr.bf16.mxu0 0
        %1207 = vmatpush1.bf16.msra.mxu0 0
        %1208 = vmatprep.subr.bf16.mxu0 0
        %1209 = vmatpush1.bf16.msra.mxu0 0
        %1210 = vmatprep.subr.bf16.mxu0 0
        %1211 = vmatpush1.bf16.msra.mxu0 0
        %1212 = vmatprep.subr.bf16.mxu0 0
        %1213 = vmatpush1.bf16.msra.mxu0 0
        %1214 = vmatprep.subr.bf16.mxu0 0
        %1215 = vmatpush1.bf16.msra.mxu0 0
        %1216 = vmatprep.subr.bf16.mxu0 0
        %1217 = vmatpush1.bf16.msra.mxu0 0
        %1218 = vmatprep.subr.bf16.mxu0 0
        %1219 = vmatpush1.bf16.msra.mxu0 0
        %1220 = vmatprep.subr.bf16.mxu0 0
        %1221 = vmatpush1.bf16.msra.mxu0 0
        %1222 = vmatprep.mubr.bf16.mxu0 0
        %1223 = vmatmul.mubr.bf16.gmra.mrb[0].mxu0 %v1185
        %v1224 = vpop.f32.mrb[0].mxu0
        %v1225 = vadd.f32 0.0, %v1224
        %v1226 = vpop.f32.mrb[0].mxu0
        %v1227 = vpop.f32.mrb[0].mxu0
        %v1228 = vpop.f32.mrb[0].mxu0
        %1229 = vdwg.mxu0
        %v1230 = vadd.f32 %v1154, %v1225
        %v1231 = vpack.c.bf16 %v821, %v821
        %1233 = vxpose.xlu0.c.b16.start [1/8] %v875, 128
        %1234 = vxpose.xlu0.c.b16.cont [2/8] 0, 128
        %1235 = vxpose.xlu0.c.b16.cont [3/8] 0, 128
        %1236 = vxpose.xlu0.c.b16.cont [4/8] 0, 128
        %1237 = vxpose.xlu0.c.b16.cont [5/8] 0, 128
        %1238 = vxpose.xlu0.c.b16.cont [6/8] 0, 128
        %1239 = vxpose.xlu0.c.b16.cont [7/8] 0, 128
        %1240 = vxpose.xlu0.c.b16.end [8/8] 0, 128
        %v1241 = vpop.trf.xlu0
        %v1242 = vpop.trf.xlu0
        %v1243 = vpop.trf.xlu0
        %v1244 = vpop.trf.xlu0
        %v1245 = vpop.trf.xlu0
        %v1246 = vpop.trf.xlu0
        %v1247 = vpop.trf.xlu0
        %v1248 = vpop.trf.xlu0
        %v1250 = vsel %vm738, %v1241, 0
        %v1253 = vsel %vm958, %v1231, 0
        %1255 = vmatprep.subr.bf16.mxu0 0
        %1256 = vmatpush1.bf16.msra.mxu0 %v1253
        %1257 = vmatprep.subr.bf16.mxu0 0
        %1258 = vmatpush1.bf16.msra.mxu0 0
        %1259 = vmatprep.subr.bf16.mxu0 0
        %1260 = vmatpush1.bf16.msra.mxu0 0
        %1261 = vmatprep.subr.bf16.mxu0 0
        %1262 = vmatpush1.bf16.msra.mxu0 0
        %1263 = vmatprep.subr.bf16.mxu0 0
        %1264 = vmatpush1.bf16.msra.mxu0 0
        %1265 = vmatprep.subr.bf16.mxu0 0
        %1266 = vmatpush1.bf16.msra.mxu0 0
        %1267 = vmatprep.subr.bf16.mxu0 0
        %1268 = vmatpush1.bf16.msra.mxu0 0
        %1269 = vmatprep.subr.bf16.mxu0 0
        %1270 = vmatpush1.bf16.msra.mxu0 0
        %1271 = vmatprep.subr.bf16.mxu0 0
        %1272 = vmatpush1.bf16.msra.mxu0 0
        %1273 = vmatprep.subr.bf16.mxu0 0
        %1274 = vmatpush1.bf16.msra.mxu0 0
        %1275 = vmatprep.subr.bf16.mxu0 0
        %1276 = vmatpush1.bf16.msra.mxu0 0
        %1277 = vmatprep.subr.bf16.mxu0 0
        %1278 = vmatpush1.bf16.msra.mxu0 0
        %1279 = vmatprep.subr.bf16.mxu0 0
        %1280 = vmatpush1.bf16.msra.mxu0 0
        %1281 = vmatprep.subr.bf16.mxu0 0
        %1282 = vmatpush1.bf16.msra.mxu0 0
        %1283 = vmatprep.subr.bf16.mxu0 0
        %1284 = vmatpush1.bf16.msra.mxu0 0
        %1285 = vmatprep.subr.bf16.mxu0 0
        %1286 = vmatpush1.bf16.msra.mxu0 0
        %1287 = vmatprep.mubr.bf16.mxu0 0
        %1288 = vmatmul.mubr.bf16.gmra.mrb[0].mxu0 %v1250
        %v1289 = vpop.f32.mrb[0].mxu0
        %v1290 = vadd.f32 0.0, %v1289
        %v1291 = vpop.f32.mrb[0].mxu0
        %v1292 = vpop.f32.mrb[0].mxu0
        %v1293 = vadd.f32 0.0, %v1292
        %v1294 = vpop.f32.mrb[0].mxu0
        %1295 = vdwg.mxu0
        %v1296 = vlaneseq
        %v1297 = vshrl.u32 %v1296, 7
        %v1298 = vsub.s32 7, %v1297
        %v1299 = vrot.slane %v813, %v1298
        %v1300 = vmul.f32 %v1299, %v823
        %v1301 = vmul.f32 %v1299, %v824
        %v1302 = vadd.f32 %v1300, %v1290
        %v1303 = vadd.f32 %v1301, %v1293
        %1304 = vst.msk [vmem:[#allocation2] sm:$0xff] %vm550, %v1302
        %1305 = vst.msk [vmem:[#allocation2 + $0x8] sm:$0xff] %vm550, %v1303
        %v1306 = vld [vmem:[%s8] sm:$0x1]
        %v1308 = vlaneseq
        %v1309 = vshrl.u32 %v1308, 7
        %v1310 = vsub.s32 0, %v1309
        %v1311 = vrot.slane %v1306, %v1310
        %v1313 = vmul.f32 %v625, %v1311
        %v1314 = vadd.f32 %v1230, %v1313
        %v1315 = vsub.f32 0.0, %v534
        %v1316 = vmul.f32 %v1315, 1.442695
        %v1317 = vpow.pop %v1316
        %v1318 = vadd.f32 %v1317, 1.0
        %v1319 = vrcp.pop %v1318
        %v1320 = vmul.f32 1.0, %v1319
        %v1321 = vmul.f32 %v534, %v1320
        %v1322 = vmul.f32 %v1314, %v1321
        %v1323 = vmul.f32 %v1322, %v1322
        %v1324 = vsel %vm550, %v1323, 0.0
        %1325 = vadd.xlane.f32.xlu0 %v1324
        %v1326 = vpop.xlane.xlu0 %1325
        %v1327 = vrcp.pop 64.0
        %v1328 = vmul.f32 %v1326, %v1327
        %v1329 = vadd.f32 %v1328, 1e-05
        %v1330 = vrsqrt.pop %v1329
        %v1331 = vmul.f32 %v1322, %v1330
        %v1332 = vld [vmem:[%s9] sm:$0x1]
        %v1334 = vlaneseq
        %v1335 = vshrl.u32 %v1334, 7
        %v1336 = vsub.s32 0, %v1335
        %v1337 = vrot.slane %v1332, %v1336
        %v1339 = vmul.f32 %v1331, %v1337
        %v1340 = vpack.c.bf16 %v1339, %v1339
        %v1341 = vld [vmem:[%s10] sm:$0xf]
        %v1342 = vld [vmem:[%s10 + $0x4] sm:$0xf]
        %v1343 = vld [vmem:[%s10 + $0x8] sm:$0xf]
        %v1344 = vld [vmem:[%s10 + $0xc] sm:$0xf]
        %v1345 = vld [vmem:[%s10 + $0x10] sm:$0xf]
        %v1346 = vld [vmem:[%s10 + $0x14] sm:$0xf]
        %v1347 = vld [vmem:[%s10 + $0x18] sm:$0xf]
        %v1348 = vld [vmem:[%s10 + $0x1c] sm:$0xf]
        %v1357 = vunpack.c.l.b16 %v1341
        %v1358 = vunpack.c.l.b16 %v1342
        %v1359 = vunpack.c.l.b16 %v1343
        %v1360 = vunpack.c.l.b16 %v1344
        %v1361 = vunpack.c.l.b16 %v1345
        %v1362 = vunpack.c.l.b16 %v1346
        %v1363 = vunpack.c.l.b16 %v1347
        %v1364 = vunpack.c.l.b16 %v1348
        %v1365 = vpack.c.b16 %v1358, %v1357
        %v1366 = vpack.c.b16 %v1360, %v1359
        %v1367 = vpack.c.b16 %v1362, %v1361
        %v1368 = vpack.c.b16 %v1364, %v1363
        %v1374 = vsel %vm550, %v1340, 0
        %1376 = vmatprep.subr.bf16.mxu0 0
        %1377 = vmatpush1.bf16.msra.mxu0 %v1365
        %1378 = vmatprep.subr.bf16.mxu0 0
        %1379 = vmatpush1.bf16.msra.mxu0 %v1366
        %1380 = vmatprep.subr.bf16.mxu0 0
        %1381 = vmatpush1.bf16.msra.mxu0 %v1367
        %1382 = vmatprep.subr.bf16.mxu0 0
        %1383 = vmatpush1.bf16.msra.mxu0 %v1368
        %1384 = vmatprep.subr.bf16.mxu0 0
        %1385 = vmatpush1.bf16.msra.mxu0 0
        %1386 = vmatprep.subr.bf16.mxu0 0
        %1387 = vmatpush1.bf16.msra.mxu0 0
        %1388 = vmatprep.subr.bf16.mxu0 0
        %1389 = vmatpush1.bf16.msra.mxu0 0
        %1390 = vmatprep.subr.bf16.mxu0 0
        %1391 = vmatpush1.bf16.msra.mxu0 0
        %1392 = vmatprep.subr.bf16.mxu0 0
        %1393 = vmatpush1.bf16.msra.mxu0 0
        %1394 = vmatprep.subr.bf16.mxu0 0
        %1395 = vmatpush1.bf16.msra.mxu0 0
        %1396 = vmatprep.subr.bf16.mxu0 0
        %1397 = vmatpush1.bf16.msra.mxu0 0
        %1398 = vmatprep.subr.bf16.mxu0 0
        %1399 = vmatpush1.bf16.msra.mxu0 0
        %1400 = vmatprep.subr.bf16.mxu0 0
        %1401 = vmatpush1.bf16.msra.mxu0 0
        %1402 = vmatprep.subr.bf16.mxu0 0
        %1403 = vmatpush1.bf16.msra.mxu0 0
        %1404 = vmatprep.subr.bf16.mxu0 0
        %1405 = vmatpush1.bf16.msra.mxu0 0
        %1406 = vmatprep.subr.bf16.mxu0 0
        %1407 = vmatpush1.bf16.msra.mxu0 0
        %1408 = vmatprep.mubr.bf16.mxu0 0
        %1409 = vmatmul.mubr.bf16.gmra.mrb[0].mxu0 %v1374
        %v1410 = vpop.f32.mrb[0].mxu0
        %v1411 = vadd.f32 0.0, %v1410
        %v1412 = vpop.f32.mrb[0].mxu0
        %v1413 = vpop.f32.mrb[0].mxu0
        %v1414 = vpop.f32.mrb[0].mxu0
        %1415 = vdwg.mxu0
        %v1416 = vadd.f32 %v452, %v1411
        %1417 = vst.msk [vmem:[%s431] sm:$0xff] %vm454, %v1416
        %s1418 = sand.u32 %s287, 1
        %s1419 = scalar_lea.sflag [#allocation6], %s1418
        %s1420 = sand.u32 %s287, 1
        %s1421 = smul.addr %s1420, 8
        %s1422 = scalar_lea.vmem [#allocation9], %s1421
        // Predicated region
        $region77: #{tpu_custom_call.1} parent=63 // pred_check
          %p1423 = pneg %p297
        $region78: #{tpu_custom_call.1} parent=63 // pred_check_branch
          %1425 = sbr.rel (%p1423) target = $region80
        $region79: #{tpu_custom_call.1} parent=63 // pred_region
          %s1427 = ssub.s32 128, 128
          %1428 = vsyncadd %s1419, %s1427
          %s1429 = smul.addr %s31, 2
          %s1430 = sadd.s32 %s32, %s1429
          %s1431 = smul.addr %s1430, 128
          %s1432 = scalar_lea.hbm %s11, %s1431
          %s1434 = sshll.u32 %s1422, 4
          %s1435 = int_to_ptr.vmem [resolvable:$true] %s1434
          %1437 = dma.vmem_to_hbm [thread:$0]  %s1435, 128, %s1432, %s1419
        $region80: #{tpu_custom_call.1} parent=63 // pred_fallthru
          _
      $region64: #{tpu_custom_call.1} parent=5 // pred_fallthru
        _
      %p1438 = scmp.le.s32.totalorder 2, %s22
      // Predicated region
      $region81: #{tpu_custom_call.1} parent=5 // pred_check
        %p1439 = pneg %p1438
      $region82: #{tpu_custom_call.1} parent=5 // pred_check_branch
        %1441 = sbr.rel (%p1439) target = $region84
      $region83: #{tpu_custom_call.1} parent=5 // pred_region
        %s1442 = ssub.s32 %s22, 2
        // Predicated region
        $region85: #{tpu_custom_call.1} parent=83 // pred_check
          %p1443 = pneg %p303
        $region86: #{tpu_custom_call.1} parent=83 // pred_check_branch
          %1445 = sbr.rel (%p1443) target = $region88
        $region87: #{tpu_custom_call.1} parent=83 // pred_region
          %s1446 = sand.u32 %s288, 1
          %s1447 = scalar_lea.sflag [#allocation6], %s1446
          %s1448 = sand.u32 %s288, 1
          %s1449 = smul.addr %s1448, 8
          %s1450 = scalar_lea.vmem [#allocation9], %s1449
          %1451 = dma.done %s1447, 128
        $region88: #{tpu_custom_call.1} parent=83 // pred_fallthru
          _
      $region84: #{tpu_custom_call.1} parent=5 // pred_fallthru
        _
    $region6: #{tpu_custom_call.1} parent=1 // loop_footer
      %s26 = sadd.s32 1, %s22
    $region7: #{tpu_custom_call.1} parent=1 // loop_footer_branch
      %21 = sbr.rel target = $region3
    $region8: #{tpu_custom_call.1} parent=1 // loop_exit
      _
    %1452 = vsyncpa [#allocation5], 1
    %s1453 = scalar_lea.sflag [#allocation5], 1
    %1454 = vsyncpa %s1453, 1
    %1455 = vsyncpa [#allocation8], 1
    %1456 = vsyncpa [#allocation6], 1
    %s1457 = scalar_lea.sflag [#allocation6], 1
    %1458 = vsyncpa %s1457, 1

</llo_original>
